<compile_context>
chip_gen: v7x
topology: tpu7x:2x2x1
jax: 0.10.0
libtpu: 0.0.40
codegen_flags: <defaults>
</compile_context>

<pallas_src>
import functools

import jax
import jax.numpy as jnp
from jax.experimental import pallas as pl
from jax.experimental.pallas import tpu as pltpu


COMPUTE_DTYPE = jnp.bfloat16   # MXU operand dtype; all accumulation stays f32
LN_EPS = 1e-6

# Preferred (MXU-aligned) tile sizes; small dims fall back to full-array blocks.
TILE_M = 256
TILE_N = 256
TILE_H = 512   # SwiGLU hidden (reduction) tile


def _tile(dim, pref):
    # Parallel axes: a partial trailing block is safe (padded rows/cols are
    # never read back), so just cap at the preferred MXU-aligned size.
    return pref if dim > pref else dim


def _tile_reduce(dim, pref):
    # Reduction axes must divide evenly (padding would pollute the accumulator).
    return pref if (dim > pref and dim % pref == 0) else dim


# ----------------------------------------------------------------------------
# Pallas kernels
# ----------------------------------------------------------------------------

def _matmul_bias_kernel(x_ref, w_ref, b_ref, o_ref):
    # o = x @ W + b   (bf16 operands, f32 accumulation)
    acc = jnp.dot(x_ref[...], w_ref[...], preferred_element_type=jnp.float32)
    o_ref[...] = (acc + b_ref[...]).astype(o_ref.dtype)


def _ln_matmul_bias_kernel(x_ref, g_ref, be_ref, w_ref, b_ref, o_ref, *, eps):
    # o = LayerNorm(x) @ W + b   (LN statistics in f32, MXU operands bf16)
    x = x_ref[...].astype(jnp.float32)
    mu = jnp.mean(x, axis=-1, keepdims=True)
    var = jnp.mean(jnp.square(x - mu), axis=-1, keepdims=True)
    y = ((x - mu) * jax.lax.rsqrt(var + eps)) * g_ref[...] + be_ref[...]
    acc = jnp.dot(y.astype(w_ref.dtype), w_ref[...],
                  preferred_element_type=jnp.float32)
    o_ref[...] = (acc + b_ref[...]).astype(o_ref.dtype)


def _matmul_bias_scale_res_kernel(x_ref, w_ref, b_ref, ls_ref, res_ref, o_ref):
    # o = residual + gamma_ls * (x @ W + b)   (LayerScale + residual epilogue)
    acc = jnp.dot(x_ref[...], w_ref[...], preferred_element_type=jnp.float32)
    out = res_ref[...].astype(jnp.float32) + ls_ref[...] * (acc + b_ref[...])
    o_ref[...] = out.astype(o_ref.dtype)


def _ln_swiglu_res_kernel(x_ref, g_ref, be_ref, w1_ref, b1_ref, w2_ref, b2_ref,
                          w3_ref, b3_ref, ls_ref, res_ref, o_ref,
                          y_s, acc_s, *, eps):
    # Fused: o = residual + gamma_ls * (SwiGLU(LayerNorm(x)) + b3)
    # Hidden dim is the (innermost) reduction grid axis; W1/W2 are streamed
    # per hidden tile so the (rows, 2*hidden) intermediate is never materialized.
    h = pl.program_id(1)

    @pl.when(h == 0)
    def _():
        x = x_ref[...].astype(jnp.float32)
        mu = jnp.mean(x, axis=-1, keepdims=True)
        var = jnp.mean(jnp.square(x - mu), axis=-1, keepdims=True)
        y = ((x - mu) * jax.lax.rsqrt(var + eps)) * g_ref[...] + be_ref[...]
        y_s[...] = y.astype(y_s.dtype)          # LN computed once, reused per h
        acc_s[...] = jnp.zeros_like(acc_s)

    y = y_s[...]
    h1 = jnp.dot(y, w1_ref[...], preferred_element_type=jnp.float32) + b1_ref[...]
    h2 = jnp.dot(y, w2_ref[...], preferred_element_type=jnp.float32) + b2_ref[...]
    gated = (h1 * jax.nn.sigmoid(h1)) * h2      # silu(h1) * h2, f32 on the VPU/EUP
    acc_s[...] += jnp.dot(gated.astype(y.dtype), w3_ref[...],
                          preferred_element_type=jnp.float32)

    @pl.when(h == pl.num_programs(1) - 1)
    def _():
        out = res_ref[...].astype(jnp.float32) + ls_ref[...] * (acc_s[...] + b3_ref[...])
        o_ref[...] = out.astype(o_ref.dtype)


def _attention_kernel(qkv_ref, o_ref, *, heads, dh, scale):
    # One batch per grid step; QKV split in-kernel (static lane slices), all
    # heads processed and re-packed so the store is lane-dense (T, heads*dh).
    D = heads * dh
    qkv = qkv_ref[0]                                  # (T, 3*D), bf16
    outs = []
    for hd in range(heads):
        q = qkv[:, hd * dh:(hd + 1) * dh]
        k = qkv[:, D + hd * dh:D + (hd + 1) * dh]
        v = qkv[:, 2 * D + hd * dh:2 * D + (hd + 1) * dh]
        # q @ k^T via dot_general contracting last dims (no explicit transpose).
        s = jax.lax.dot_general(q, k, (((1,), (1,)), ((), ())),
                                preferred_element_type=jnp.float32) * scale
        s = s - jnp.max(s, axis=-1, keepdims=True)
        p = jnp.exp(s)
        p = p * pl.reciprocal(jnp.sum(p, axis=-1, keepdims=True), approx=True)
        outs.append(jnp.dot(p.astype(v.dtype), v,
                            preferred_element_type=jnp.float32))
    o_ref[0] = jnp.concatenate(outs, axis=-1).astype(o_ref.dtype)


# ----------------------------------------------------------------------------
# Pallas wrappers (tiled grids, K never tiled — D <= 1536 rows fit VMEM easily)
# ----------------------------------------------------------------------------

def matmul_bias(x, w, b, *, out_dtype=None):
    M, K = x.shape
    _, N = w.shape
    out_dtype = out_dtype or x.dtype
    tm, tn = _tile(M, TILE_M), _tile(N, TILE_N)
    return pl.pallas_call(
        _matmul_bias_kernel,
        out_shape=jax.ShapeDtypeStruct((M, N), out_dtype),
        grid=(pl.cdiv(M, tm), pl.cdiv(N, tn)),
        in_specs=[
            pl.BlockSpec((tm, K), lambda i, j: (i, 0)),
            pl.BlockSpec((K, tn), lambda i, j: (0, j)),
            pl.BlockSpec((1, tn), lambda i, j: (0, j)),
        ],
        out_specs=pl.BlockSpec((tm, tn), lambda i, j: (i, j)),
        compiler_params=pltpu.CompilerParams(
            dimension_semantics=("parallel", "parallel")),
    )(x, w, b.reshape(1, N))


def ln_matmul_bias(x, gamma, beta, w, b, *, out_dtype=None, eps=LN_EPS):
    M, K = x.shape
    _, N = w.shape
    out_dtype = out_dtype or x.dtype
    tm, tn = _tile(M, TILE_M), _tile(N, TILE_N)
    return pl.pallas_call(
        functools.partial(_ln_matmul_bias_kernel, eps=eps),
        out_shape=jax.ShapeDtypeStruct((M, N), out_dtype),
        grid=(pl.cdiv(M, tm), pl.cdiv(N, tn)),
        in_specs=[
            pl.BlockSpec((tm, K), lambda i, j: (i, 0)),
            pl.BlockSpec((1, K), lambda i, j: (0, 0)),
            pl.BlockSpec((1, K), lambda i, j: (0, 0)),
            pl.BlockSpec((K, tn), lambda i, j: (0, j)),
            pl.BlockSpec((1, tn), lambda i, j: (0, j)),
        ],
        out_specs=pl.BlockSpec((tm, tn), lambda i, j: (i, j)),
        compiler_params=pltpu.CompilerParams(
            dimension_semantics=("parallel", "parallel")),
    )(x, gamma.reshape(1, K), beta.reshape(1, K), w, b.reshape(1, N))


def matmul_bias_scale_res(x, w, b, ls, res):
    M, K = x.shape
    _, N = w.shape
    tm, tn = _tile(M, TILE_M), _tile(N, TILE_N)
    return pl.pallas_call(
        _matmul_bias_scale_res_kernel,
        out_shape=jax.ShapeDtypeStruct((M, N), res.dtype),
        grid=(pl.cdiv(M, tm), pl.cdiv(N, tn)),
        in_specs=[
            pl.BlockSpec((tm, K), lambda i, j: (i, 0)),
            pl.BlockSpec((K, tn), lambda i, j: (0, j)),
            pl.BlockSpec((1, tn), lambda i, j: (0, j)),
            pl.BlockSpec((1, tn), lambda i, j: (0, j)),
            pl.BlockSpec((tm, tn), lambda i, j: (i, j)),
        ],
        out_specs=pl.BlockSpec((tm, tn), lambda i, j: (i, j)),
        compiler_params=pltpu.CompilerParams(
            dimension_semantics=("parallel", "parallel")),
    )(x, w, b.reshape(1, N), ls.reshape(1, N), res)


def ln_swiglu_res(x, gamma, beta, w1, b1, w2, b2, w3, b3, ls, res, *, eps=LN_EPS):
    M, D = x.shape
    Hd = w1.shape[1]
    tm = _tile(M, TILE_M)
    th = _tile_reduce(Hd, TILE_H)
    return pl.pallas_call(
        functools.partial(_ln_swiglu_res_kernel, eps=eps),
        out_shape=jax.ShapeDtypeStruct((M, D), res.dtype),
        grid=(pl.cdiv(M, tm), Hd // th),
        in_specs=[
            pl.BlockSpec((tm, D), lambda i, h: (i, 0)),    # x
            pl.BlockSpec((1, D), lambda i, h: (0, 0)),     # norm gamma
            pl.BlockSpec((1, D), lambda i, h: (0, 0)),     # norm beta
            pl.BlockSpec((D, th), lambda i, h: (0, h)),    # W1
            pl.BlockSpec((1, th), lambda i, h: (0, h)),    # b1
            pl.BlockSpec((D, th), lambda i, h: (0, h)),    # W2
            pl.BlockSpec((1, th), lambda i, h: (0, h)),    # b2
            pl.BlockSpec((th, D), lambda i, h: (h, 0)),    # W3
            pl.BlockSpec((1, D), lambda i, h: (0, 0)),     # b3
            pl.BlockSpec((1, D), lambda i, h: (0, 0)),     # LayerScale gamma
            pl.BlockSpec((tm, D), lambda i, h: (i, 0)),    # residual
        ],
        out_specs=pl.BlockSpec((tm, D), lambda i, h: (i, 0)),
        scratch_shapes=[
            pltpu.VMEM((tm, D), w1.dtype),     # LN(x) cached across hidden tiles
            pltpu.VMEM((tm, D), jnp.float32),  # f32 accumulator
        ],
        compiler_params=pltpu.CompilerParams(
            dimension_semantics=("parallel", "arbitrary")),
    )(x, gamma.reshape(1, D), beta.reshape(1, D),
      w1, b1.reshape(1, Hd)[:, :Hd].reshape(1, Hd) if False else b1.reshape(1, Hd),
      w2, b2.reshape(1, Hd), w3, b3.reshape(1, D), ls.reshape(1, D), res)


def attention(qkv, *, heads, dh, scale):
    B, T, threeD = qkv.shape
    D = heads * dh
    return pl.pallas_call(
        functools.partial(_attention_kernel, heads=heads, dh=dh, scale=scale),
        out_shape=jax.ShapeDtypeStruct((B, T, D), qkv.dtype),
        grid=(B,),
        in_specs=[pl.BlockSpec((1, T, threeD), lambda b: (b, 0, 0))],
        out_specs=pl.BlockSpec((1, T, D), lambda b: (b, 0, 0)),
        compiler_params=pltpu.CompilerParams(dimension_semantics=("parallel",)),
    )(qkv)


# ----------------------------------------------------------------------------
# Model glue (reshapes / parameter plumbing stay in plain JAX)
# ----------------------------------------------------------------------------

def patchify(x, patch):
    # NCHW -> (N, num_patches, C*P*P), matching conv(kernel=stride=P) unrolling.
    N, C, H, W = x.shape
    Hp, Wp = H // patch, W // patch
    x = x.reshape(N, C, Hp, patch, Wp, patch)
    x = x.transpose(0, 2, 4, 1, 3, 5)              # (N, Hp, Wp, C, P, P)
    return x.reshape(N, Hp * Wp, C * patch * patch)


def init_params(key, *, C, patch, D, heads, depth, ffn_hidden, D_out, T):
    def nrm(k, shape, s=0.02):
        return jax.random.normal(k, shape, dtype=jnp.float32) * s

    keys = jax.random.split(key, 8 + depth)
    params = {
        "image_mean": jnp.array([0.485, 0.456, 0.406], dtype=jnp.float32),
        "image_std": jnp.array([0.229, 0.224, 0.225], dtype=jnp.float32),
        "patch_w": nrm(keys[0], (C * patch * patch, D)),
        "patch_b": jnp.zeros((D,), jnp.float32),
        "cls_token": nrm(keys[1], (1, 1, D)),
        "pos_embed": nrm(keys[2], (1, T, D)),
        "norm_g": jnp.ones((D,), jnp.float32),
        "norm_b": jnp.zeros((D,), jnp.float32),
        "proj_out_w": nrm(keys[3], (D, D_out)),
        "proj_out_b": jnp.zeros((D_out,), jnp.float32),
        "blocks": [],
    }
    for i in range(depth):
        bk = jax.random.split(keys[8 + i], 6)
        params["blocks"].append({
            "norm1_g": jnp.ones((D,), jnp.float32),
            "norm1_b": jnp.zeros((D,), jnp.float32),
            "qkv_w": nrm(bk[0], (D, 3 * D)),
            "qkv_b": jnp.zeros((3 * D,), jnp.float32),
            "proj_w": nrm(bk[1], (D, D)),
            "proj_b": jnp.zeros((D,), jnp.float32),
            "ls1": jnp.full((D,), 1e-5, jnp.float32),
            "norm2_g": jnp.ones((D,), jnp.float32),
            "norm2_b": jnp.zeros((D,), jnp.float32),
            "w12": nrm(bk[2], (D, 2 * ffn_hidden)),
            "b12": jnp.zeros((2 * ffn_hidden,), jnp.float32),
            "w3": nrm(bk[3], (ffn_hidden, D)),
            "b3": jnp.zeros((D,), jnp.float32),
            "ls2": jnp.full((D,), 1e-5, jnp.float32),
        })
    return params


def prepare_params(params, *, patch, hidden, compute_dtype=COMPUTE_DTYPE):
    """One-time (frozen weights) prep: fold (x-mean)/std into the patch embed,
    split SwiGLU W12 into W1/W2, cast MXU weights to bf16 (biases/norms f32)."""
    cdt = compute_dtype
    p2 = patch * patch
    mean_r = jnp.repeat(params["image_mean"], p2)      # row order is (C, P, P)
    std_r = jnp.repeat(params["image_std"], p2)
    w = params["patch_w"]
    patch_w = (w / std_r[:, None]).astype(cdt)
    patch_b = params["patch_b"] - (mean_r / std_r) @ w

    out = {
        "patch_w": patch_w,
        "patch_b": patch_b,
        "cls_token": params["cls_token"].astype(cdt),
        "pos_embed": params["pos_embed"].astype(cdt),
        "norm_g": params["norm_g"], "norm_b": params["norm_b"],
        "proj_out_w": params["proj_out_w"].astype(cdt),
        "proj_out_b": params["proj_out_b"],
        "blocks": [],
    }
    for blk in params["blocks"]:
        out["blocks"].append({
            "norm1_g": blk["norm1_g"], "norm1_b": blk["norm1_b"],
            "qkv_w": blk["qkv_w"].astype(cdt), "qkv_b": blk["qkv_b"],
            "proj_w": blk["proj_w"].astype(cdt), "proj_b": blk["proj_b"],
            "ls1": blk["ls1"],
            "norm2_g": blk["norm2_g"], "norm2_b": blk["norm2_b"],
            "w1": blk["w12"][:, :hidden].astype(cdt), "b1": blk["b12"][:hidden],
            "w2": blk["w12"][:, hidden:].astype(cdt), "b2": blk["b12"][hidden:],
            "w3": blk["w3"].astype(cdt), "b3": blk["b3"],
            "ls2": blk["ls2"],
        })
    return out


def frozen_dinov2_encoder_forward(image, prepped, *, patch, heads):
    B, C, H, W = image.shape
    D = prepped["patch_w"].shape[1]
    dh = D // heads

    # --- patch embedding (normalization folded into the frozen conv weights) ---
    patches = patchify(image, patch)                               # (B, Np, C*P*P)
    Np = patches.shape[1]
    tok = matmul_bias(patches.reshape(B * Np, -1).astype(COMPUTE_DTYPE),
                      prepped["patch_w"], prepped["patch_b"],
                      out_dtype=COMPUTE_DTYPE).reshape(B, Np, D)

    # --- cls token + positional embedding --------------------------------------
    cls = jnp.broadcast_to(prepped["cls_token"], (B, 1, D))
    x = jnp.concatenate([cls, tok], axis=1) + prepped["pos_embed"]  # (B, T, D)
    T = Np + 1
    x2d = x.reshape(B * T, D)

    # --- transformer blocks (4 fused pallas_calls per block) --------------------
    for blk in prepped["blocks"]:
        qkv = ln_matmul_bias(x2d, blk["norm1_g"], blk["norm1_b"],
                             blk["qkv_w"], blk["qkv_b"],
                             out_dtype=COMPUTE_DTYPE)               # (B*T, 3D)
        attn = attention(qkv.reshape(B, T, 3 * D), heads=heads, dh=dh,
                         scale=dh ** -0.5)                          # (B, T, D)
        x2d = matmul_bias_scale_res(attn.reshape(B * T, D),
                                    blk["proj_w"], blk["proj_b"],
                                    blk["ls1"], x2d)
        x2d = ln_swiglu_res(x2d, blk["norm2_g"], blk["norm2_b"],
                            blk["w1"], blk["b1"], blk["w2"], blk["b2"],
                            blk["w3"], blk["b3"], blk["ls2"], x2d)

    # --- final LayerNorm + projector (cat([cls, patch_tokens]) is the identity
    #     re-assembly of the normalized tokens, so it is elided) -----------------
    hint = ln_matmul_bias(x2d, prepped["norm_g"], prepped["norm_b"],
                          prepped["proj_out_w"], prepped["proj_out_b"],
                          out_dtype=jnp.float32)
    D_out = prepped["proj_out_w"].shape[1]
    return hint.reshape(B, T, D_out)


# TODO(synk): the real module loads pretrained ViT-g/14 weights via torch.load;
# here the same architecture is instantiated at small scale with deterministic init.

if __name__ == "__main__":
    B, C, H, W = 2, 3, 16, 16
    PATCH, D, HEADS, DEPTH, FFN_HIDDEN, D_OUT = 8, 32, 2, 2, 64, 24
    T = (H // PATCH) * (W // PATCH) + 1   # patches + cls

    key = jax.random.PRNGKey(0)
    k_img, k_par = jax.random.split(key)
    image = jax.random.uniform(k_img, (B, C, H, W), dtype=jnp.float32)
    params = init_params(k_par, C=C, patch=PATCH, D=D, heads=HEADS,
                         depth=DEPTH, ffn_hidden=FFN_HIDDEN, D_out=D_OUT, T=T)
    prepped = prepare_params(params, patch=PATCH, hidden=FFN_HIDDEN)

    fwd = jax.jit(functools.partial(frozen_dinov2_encoder_forward,
                                    patch=PATCH, heads=HEADS))
    hint = fwd(image, prepped)
    jax.block_until_ready(hint)
    assert hint.shape == (B, T, D_OUT), hint.shape
    print("KERNEL_OK")
</pallas_src>

<mosaic_0001>
module attributes {stable_mosaic.version = 11 : i64} {
  func.func @_attention_kernel(%arg0: i32, %arg1: memref<1x5x96xbf16, #tpu.memory_space<vmem>>, %arg2: memref<1x5x32xbf16, #tpu.memory_space<vmem>>) attributes {dimension_semantics = [#tpu.dimension_semantics<parallel>], iteration_bounds = array<i64: 2>, scalar_prefetch = 0 : i64, scratch_operands = 0 : i64, tpu.core_type = #tpu.core_type<tc>, window_params = [{transform_indices = @transform_0, window_bounds = array<i64: 1, 5, 96>}, {transform_indices = @transform_1, window_bounds = array<i64: 1, 5, 32>}]} {
    %c0 = arith.constant 0 : index
    %c0_0 = arith.constant 0 : index
    %c0_1 = arith.constant 0 : index
    %0 = vector.load %arg1[%c0, %c0_0, %c0_1] : memref<1x5x96xbf16, #tpu.memory_space<vmem>>, vector<1x5x96xbf16>
    %1 = vector.shape_cast %0 : vector<1x5x96xbf16> to vector<5x96xbf16>
    %2 = vector.extract_strided_slice %1 {offsets = [0, 0], sizes = [5, 16], strides = [1, 1]} : vector<5x96xbf16> to vector<5x16xbf16>
    %3 = vector.extract_strided_slice %1 {offsets = [0, 32], sizes = [5, 16], strides = [1, 1]} : vector<5x96xbf16> to vector<5x16xbf16>
    %4 = vector.extract_strided_slice %1 {offsets = [0, 64], sizes = [5, 16], strides = [1, 1]} : vector<5x96xbf16> to vector<5x16xbf16>
    %cst = arith.constant dense<0.000000e+00> : vector<5x5xf32>
    %5 = tpu.matmul %2, %3, %cst {dimension_numbers = #tpu.dot_dimension_numbers<[1], [1], [0], [0], [0, 0, 1, 0], [], []>} : vector<5x16xbf16>, vector<5x16xbf16>, vector<5x5xf32> -> vector<5x5xf32>
    %cst_2 = arith.constant 2.500000e-01 : f32
    %6 = vector.broadcast %cst_2 : f32 to vector<5x5xf32>
    %7 = arith.mulf %5, %6 : vector<5x5xf32>
    %cst_3 = arith.constant dense<0xFF800000> : vector<5xf32>
    %8 = vector.multi_reduction <maximumf>, %7, %cst_3 [1] : vector<5x5xf32> to vector<5xf32>
    %9 = vector.shape_cast %8 : vector<5xf32> to vector<5x1xf32>
    %10 = vector.broadcast %9 : vector<5x1xf32> to vector<5x5xf32>
    %11 = arith.subf %7, %10 : vector<5x5xf32>
    %12 = math.exp %11 : vector<5x5xf32>
    %cst_4 = arith.constant dense<0.000000e+00> : vector<5xf32>
    %13 = vector.multi_reduction <add>, %12, %cst_4 [1] : vector<5x5xf32> to vector<5xf32>
    %14 = vector.shape_cast %13 : vector<5xf32> to vector<5x1xf32>
    %15 = tpu.reciprocal %14 {approx = true} : vector<5x1xf32> -> vector<5x1xf32>
    %16 = vector.broadcast %15 : vector<5x1xf32> to vector<5x5xf32>
    %17 = arith.mulf %12, %16 : vector<5x5xf32>
    %18 = arith.truncf %17 : vector<5x5xf32> to vector<5x5xbf16>
    %cst_5 = arith.constant dense<0.000000e+00> : vector<5x16xf32>
    %19 = tpu.matmul %18, %4, %cst_5 {dimension_numbers = #tpu.dot_dimension_numbers<[1], [0], [0], [1], [0, 0, 1, 1], [], []>} : vector<5x5xbf16>, vector<5x16xbf16>, vector<5x16xf32> -> vector<5x16xf32>
    %20 = vector.extract_strided_slice %1 {offsets = [0, 16], sizes = [5, 16], strides = [1, 1]} : vector<5x96xbf16> to vector<5x16xbf16>
    %21 = vector.extract_strided_slice %1 {offsets = [0, 48], sizes = [5, 16], strides = [1, 1]} : vector<5x96xbf16> to vector<5x16xbf16>
    %22 = vector.extract_strided_slice %1 {offsets = [0, 80], sizes = [5, 16], strides = [1, 1]} : vector<5x96xbf16> to vector<5x16xbf16>
    %cst_6 = arith.constant dense<0.000000e+00> : vector<5x5xf32>
    %23 = tpu.matmul %20, %21, %cst_6 {dimension_numbers = #tpu.dot_dimension_numbers<[1], [1], [0], [0], [0, 0, 1, 0], [], []>} : vector<5x16xbf16>, vector<5x16xbf16>, vector<5x5xf32> -> vector<5x5xf32>
    %cst_7 = arith.constant 2.500000e-01 : f32
    %24 = vector.broadcast %cst_7 : f32 to vector<5x5xf32>
    %25 = arith.mulf %23, %24 : vector<5x5xf32>
    %cst_8 = arith.constant dense<0xFF800000> : vector<5xf32>
    %26 = vector.multi_reduction <maximumf>, %25, %cst_8 [1] : vector<5x5xf32> to vector<5xf32>
    %27 = vector.shape_cast %26 : vector<5xf32> to vector<5x1xf32>
    %28 = vector.broadcast %27 : vector<5x1xf32> to vector<5x5xf32>
    %29 = arith.subf %25, %28 : vector<5x5xf32>
    %30 = math.exp %29 : vector<5x5xf32>
    %cst_9 = arith.constant dense<0.000000e+00> : vector<5xf32>
    %31 = vector.multi_reduction <add>, %30, %cst_9 [1] : vector<5x5xf32> to vector<5xf32>
    %32 = vector.shape_cast %31 : vector<5xf32> to vector<5x1xf32>
    %33 = tpu.reciprocal %32 {approx = true} : vector<5x1xf32> -> vector<5x1xf32>
    %34 = vector.broadcast %33 : vector<5x1xf32> to vector<5x5xf32>
    %35 = arith.mulf %30, %34 : vector<5x5xf32>
    %36 = arith.truncf %35 : vector<5x5xf32> to vector<5x5xbf16>
    %cst_10 = arith.constant dense<0.000000e+00> : vector<5x16xf32>
    %37 = tpu.matmul %36, %22, %cst_10 {dimension_numbers = #tpu.dot_dimension_numbers<[1], [0], [0], [1], [0, 0, 1, 1], [], []>} : vector<5x5xbf16>, vector<5x16xbf16>, vector<5x16xf32> -> vector<5x16xf32>
    %38 = tpu.concatenate %19, %37 in 1 : vector<5x16xf32>, vector<5x16xf32> -> vector<5x32xf32>
    %39 = arith.truncf %38 : vector<5x32xf32> to vector<5x32xbf16>
    %c0_11 = arith.constant 0 : index
    %c0_12 = arith.constant 0 : index
    %c0_13 = arith.constant 0 : index
    %40 = vector.load %arg2[%c0_11, %c0_12, %c0_13] : memref<1x5x32xbf16, #tpu.memory_space<vmem>>, vector<1x5x32xbf16>
    %41 = vector.shape_cast %40 : vector<1x5x32xbf16> to vector<5x32xbf16>
    %42 = vector.shape_cast %39 : vector<5x32xbf16> to vector<1x5x32xbf16>
    tpu.vector_store %arg2[%c0_11, %c0_12, %c0_13], %42 {strides = array<i32>} : memref<1x5x32xbf16, #tpu.memory_space<vmem>>, vector<1x5x32xbf16>,
    return
  }
  func.func @transform_0(%arg0: i32) -> (i32, i32, i32) {
    %c0_i32 = arith.constant 0 : i32
    %c0_i32_0 = arith.constant 0 : i32
    %c0_i32_1 = arith.constant 0 : i32
    return %arg0, %c0_i32, %c0_i32_0 : i32, i32, i32
  }
  func.func @transform_1(%arg0: i32) -> (i32, i32, i32) {
    %c0_i32 = arith.constant 0 : i32
    %c0_i32_0 = arith.constant 0 : i32
    %c0_i32_1 = arith.constant 0 : i32
    return %arg0, %c0_i32, %c0_i32_0 : i32, i32, i32
  }
}

module attributes {stable_mosaic.version = 11 : i64} {
  func.func @_matmul_bias_kernel(%arg0: i32, %arg1: i32, %arg2: memref<8x192xbf16, #tpu.memory_space<vmem>>, %arg3: memref<192x32xbf16, #tpu.memory_space<vmem>>, %arg4: memref<1x32xf32, #tpu.memory_space<vmem>>, %arg5: memref<8x32xbf16, #tpu.memory_space<vmem>>) attributes {dimension_semantics = [#tpu.dimension_semantics<parallel>, #tpu.dimension_semantics<parallel>], iteration_bounds = array<i64: 1, 1>, scalar_prefetch = 0 : i64, scratch_operands = 0 : i64, tpu.core_type = #tpu.core_type<tc>, window_params = [{transform_indices = @transform_0, window_bounds = array<i64: 8, 192>}, {transform_indices = @transform_1, window_bounds = array<i64: 192, 32>}, {transform_indices = @transform_2, window_bounds = array<i64: 1, 32>}, {transform_indices = @transform_3, window_bounds = array<i64: 8, 32>}]} {
    %c0 = arith.constant 0 : index
    %c0_0 = arith.constant 0 : index
    %0 = vector.load %arg2[%c0, %c0_0] : memref<8x192xbf16, #tpu.memory_space<vmem>>, vector<8x192xbf16>
    %c0_1 = arith.constant 0 : index
    %c0_2 = arith.constant 0 : index
    %1 = vector.load %arg3[%c0_1, %c0_2] : memref<192x32xbf16, #tpu.memory_space<vmem>>, vector<192x32xbf16>
    %cst = arith.constant dense<0.000000e+00> : vector<8x32xf32>
    %2 = tpu.matmul %0, %1, %cst {dimension_numbers = #tpu.dot_dimension_numbers<[1], [0], [0], [1], [0, 0, 1, 1], [], []>} : vector<8x192xbf16>, vector<192x32xbf16>, vector<8x32xf32> -> vector<8x32xf32>
    %c0_3 = arith.constant 0 : index
    %c0_4 = arith.constant 0 : index
    %3 = vector.load %arg4[%c0_3, %c0_4] : memref<1x32xf32, #tpu.memory_space<vmem>>, vector<1x32xf32>
    %4 = vector.broadcast %3 : vector<1x32xf32> to vector<8x32xf32>
    %5 = arith.addf %2, %4 : vector<8x32xf32>
    %6 = arith.truncf %5 : vector<8x32xf32> to vector<8x32xbf16>
    %c0_5 = arith.constant 0 : index
    %c0_6 = arith.constant 0 : index
    %7 = vector.load %arg5[%c0_5, %c0_6] : memref<8x32xbf16, #tpu.memory_space<vmem>>, vector<8x32xbf16>
    tpu.vector_store %arg5[%c0_5, %c0_6], %6 {strides = array<i32>} : memref<8x32xbf16, #tpu.memory_space<vmem>>, vector<8x32xbf16>,
    return
  }
  func.func @transform_0(%arg0: i32, %arg1: i32) -> (i32, i32) {
    %c0_i32 = arith.constant 0 : i32
    %c0_i32_0 = arith.constant 0 : i32
    return %arg0, %c0_i32 : i32, i32
  }
  func.func @transform_1(%arg0: i32, %arg1: i32) -> (i32, i32) {
    %c0_i32 = arith.constant 0 : i32
    %c0_i32_0 = arith.constant 0 : i32
    return %c0_i32, %arg1 : i32, i32
  }
  func.func @transform_2(%arg0: i32, %arg1: i32) -> (i32, i32) {
    %c0_i32 = arith.constant 0 : i32
    %c0_i32_0 = arith.constant 0 : i32
    return %c0_i32, %arg1 : i32, i32
  }
  func.func @transform_3(%arg0: i32, %arg1: i32) -> (i32, i32) {
    %c0_i32 = arith.constant 0 : i32
    return %arg0, %arg1 : i32, i32
  }
}

module attributes {stable_mosaic.version = 11 : i64} {
  func.func @_matmul_bias_scale_res_kernel(%arg0: i32, %arg1: i32, %arg2: memref<10x32xbf16, #tpu.memory_space<vmem>>, %arg3: memref<32x32xbf16, #tpu.memory_space<vmem>>, %arg4: memref<1x32xf32, #tpu.memory_space<vmem>>, %arg5: memref<1x32xf32, #tpu.memory_space<vmem>>, %arg6: memref<10x32xbf16, #tpu.memory_space<vmem>>, %arg7: memref<10x32xbf16, #tpu.memory_space<vmem>>) attributes {dimension_semantics = [#tpu.dimension_semantics<parallel>, #tpu.dimension_semantics<parallel>], iteration_bounds = array<i64: 1, 1>, scalar_prefetch = 0 : i64, scratch_operands = 0 : i64, tpu.core_type = #tpu.core_type<tc>, window_params = [{transform_indices = @transform_0, window_bounds = array<i64: 10, 32>}, {transform_indices = @transform_1, window_bounds = array<i64: 32, 32>}, {transform_indices = @transform_2, window_bounds = array<i64: 1, 32>}, {transform_indices = @transform_3, window_bounds = array<i64: 1, 32>}, {transform_indices = @transform_4, window_bounds = array<i64: 10, 32>}, {transform_indices = @transform_5, window_bounds = array<i64: 10, 32>}]} {
    %c0 = arith.constant 0 : index
    %c0_0 = arith.constant 0 : index
    %0 = vector.load %arg2[%c0, %c0_0] : memref<10x32xbf16, #tpu.memory_space<vmem>>, vector<10x32xbf16>
    %c0_1 = arith.constant 0 : index
    %c0_2 = arith.constant 0 : index
    %1 = vector.load %arg3[%c0_1, %c0_2] : memref<32x32xbf16, #tpu.memory_space<vmem>>, vector<32x32xbf16>
    %cst = arith.constant dense<0.000000e+00> : vector<10x32xf32>
    %2 = tpu.matmul %0, %1, %cst {dimension_numbers = #tpu.dot_dimension_numbers<[1], [0], [0], [1], [0, 0, 1, 1], [], []>} : vector<10x32xbf16>, vector<32x32xbf16>, vector<10x32xf32> -> vector<10x32xf32>
    %c0_3 = arith.constant 0 : index
    %c0_4 = arith.constant 0 : index
    %3 = vector.load %arg6[%c0_3, %c0_4] : memref<10x32xbf16, #tpu.memory_space<vmem>>, vector<10x32xbf16>
    %4 = arith.extf %3 : vector<10x32xbf16> to vector<10x32xf32>
    %c0_5 = arith.constant 0 : index
    %c0_6 = arith.constant 0 : index
    %5 = vector.load %arg5[%c0_5, %c0_6] : memref<1x32xf32, #tpu.memory_space<vmem>>, vector<1x32xf32>
    %c0_7 = arith.constant 0 : index
    %c0_8 = arith.constant 0 : index
    %6 = vector.load %arg4[%c0_7, %c0_8] : memref<1x32xf32, #tpu.memory_space<vmem>>, vector<1x32xf32>
    %7 = vector.broadcast %6 : vector<1x32xf32> to vector<10x32xf32>
    %8 = arith.addf %2, %7 : vector<10x32xf32>
    %9 = vector.broadcast %5 : vector<1x32xf32> to vector<10x32xf32>
    %10 = arith.mulf %9, %8 : vector<10x32xf32>
    %11 = arith.addf %4, %10 : vector<10x32xf32>
    %12 = arith.truncf %11 : vector<10x32xf32> to vector<10x32xbf16>
    %c0_9 = arith.constant 0 : index
    %c0_10 = arith.constant 0 : index
    %13 = vector.load %arg7[%c0_9, %c0_10] : memref<10x32xbf16, #tpu.memory_space<vmem>>, vector<10x32xbf16>
    tpu.vector_store %arg7[%c0_9, %c0_10], %12 {strides = array<i32>} : memref<10x32xbf16, #tpu.memory_space<vmem>>, vector<10x32xbf16>,
    return
  }
  func.func @transform_0(%arg0: i32, %arg1: i32) -> (i32, i32) {
    %c0_i32 = arith.constant 0 : i32
    %c0_i32_0 = arith.constant 0 : i32
    return %arg0, %c0_i32 : i32, i32
  }
  func.func @transform_1(%arg0: i32, %arg1: i32) -> (i32, i32) {
    %c0_i32 = arith.constant 0 : i32
    %c0_i32_0 = arith.constant 0 : i32
    return %c0_i32, %arg1 : i32, i32
  }
  func.func @transform_2(%arg0: i32, %arg1: i32) -> (i32, i32) {
    %c0_i32 = arith.constant 0 : i32
    %c0_i32_0 = arith.constant 0 : i32
    return %c0_i32, %arg1 : i32, i32
  }
  func.func @transform_3(%arg0: i32, %arg1: i32) -> (i32, i32) {
    %c0_i32 = arith.constant 0 : i32
    %c0_i32_0 = arith.constant 0 : i32
    return %c0_i32, %arg1 : i32, i32
  }
  func.func @transform_4(%arg0: i32, %arg1: i32) -> (i32, i32) {
    %c0_i32 = arith.constant 0 : i32
    return %arg0, %arg1 : i32, i32
  }
  func.func @transform_5(%arg0: i32, %arg1: i32) -> (i32, i32) {
    %c0_i32 = arith.constant 0 : i32
    return %arg0, %arg1 : i32, i32
  }
}

module attributes {stable_mosaic.version = 11 : i64} {
  func.func @_ln_matmul_bias_kernel(%arg0: i32, %arg1: i32, %arg2: memref<10x32xbf16, #tpu.memory_space<vmem>>, %arg3: memref<1x32xf32, #tpu.memory_space<vmem>>, %arg4: memref<1x32xf32, #tpu.memory_space<vmem>>, %arg5: memref<32x96xbf16, #tpu.memory_space<vmem>>, %arg6: memref<1x96xf32, #tpu.memory_space<vmem>>, %arg7: memref<10x96xbf16, #tpu.memory_space<vmem>>) attributes {dimension_semantics = [#tpu.dimension_semantics<parallel>, #tpu.dimension_semantics<parallel>], iteration_bounds = array<i64: 1, 1>, scalar_prefetch = 0 : i64, scratch_operands = 0 : i64, tpu.core_type = #tpu.core_type<tc>, window_params = [{transform_indices = @transform_0, window_bounds = array<i64: 10, 32>}, {pipeline_mode = #tpu.pipeline_mode<synchronous>, transform_indices = @transform_1, window_bounds = array<i64: 1, 32>}, {pipeline_mode = #tpu.pipeline_mode<synchronous>, transform_indices = @transform_2, window_bounds = array<i64: 1, 32>}, {transform_indices = @transform_3, window_bounds = array<i64: 32, 96>}, {transform_indices = @transform_4, window_bounds = array<i64: 1, 96>}, {transform_indices = @transform_5, window_bounds = array<i64: 10, 96>}]} {
    %c0 = arith.constant 0 : index
    %c0_0 = arith.constant 0 : index
    %0 = vector.load %arg2[%c0, %c0_0] : memref<10x32xbf16, #tpu.memory_space<vmem>>, vector<10x32xbf16>
    %1 = arith.extf %0 : vector<10x32xbf16> to vector<10x32xf32>
    %cst = arith.constant dense<0.000000e+00> : vector<10xf32>
    %2 = vector.multi_reduction <add>, %1, %cst [1] : vector<10x32xf32> to vector<10xf32>
    %3 = vector.shape_cast %2 : vector<10xf32> to vector<10x1xf32>
    %cst_1 = arith.constant 3.200000e+01 : f32
    %4 = vector.broadcast %cst_1 : f32 to vector<10x1xf32>
    %5 = arith.divf %3, %4 : vector<10x1xf32>
    %6 = vector.broadcast %5 : vector<10x1xf32> to vector<10x32xf32>
    %7 = arith.subf %1, %6 : vector<10x32xf32>
    %8 = arith.mulf %7, %7 : vector<10x32xf32>
    %cst_2 = arith.constant dense<0.000000e+00> : vector<10xf32>
    %9 = vector.multi_reduction <add>, %8, %cst_2 [1] : vector<10x32xf32> to vector<10xf32>
    %10 = vector.shape_cast %9 : vector<10xf32> to vector<10x1xf32>
    %cst_3 = arith.constant 3.200000e+01 : f32
    %11 = vector.broadcast %cst_3 : f32 to vector<10x1xf32>
    %12 = arith.divf %10, %11 : vector<10x1xf32>
    %13 = vector.broadcast %5 : vector<10x1xf32> to vector<10x32xf32>
    %14 = arith.subf %1, %13 : vector<10x32xf32>
    %cst_4 = arith.constant 9.99999997E-7 : f32
    %15 = vector.broadcast %cst_4 : f32 to vector<10x1xf32>
    %16 = arith.addf %12, %15 : vector<10x1xf32>
    %17 = math.rsqrt %16 : vector<10x1xf32>
    %18 = vector.broadcast %17 : vector<10x1xf32> to vector<10x32xf32>
    %19 = arith.mulf %14, %18 : vector<10x32xf32>
    %c0_5 = arith.constant 0 : index
    %c0_6 = arith.constant 0 : index
    %20 = vector.load %arg3[%c0_5, %c0_6] : memref<1x32xf32, #tpu.memory_space<vmem>>, vector<1x32xf32>
    %21 = vector.broadcast %20 : vector<1x32xf32> to vector<10x32xf32>
    %22 = arith.mulf %19, %21 : vector<10x32xf32>
    %c0_7 = arith.constant 0 : index
    %c0_8 = arith.constant 0 : index
    %23 = vector.load %arg4[%c0_7, %c0_8] : memref<1x32xf32, #tpu.memory_space<vmem>>, vector<1x32xf32>
    %24 = vector.broadcast %23 : vector<1x32xf32> to vector<10x32xf32>
    %25 = arith.addf %22, %24 : vector<10x32xf32>
    %26 = arith.truncf %25 : vector<10x32xf32> to vector<10x32xbf16>
    %c0_9 = arith.constant 0 : index
    %c0_10 = arith.constant 0 : index
    %27 = vector.load %arg5[%c0_9, %c0_10] : memref<32x96xbf16, #tpu.memory_space<vmem>>, vector<32x96xbf16>
    %cst_11 = arith.constant dense<0.000000e+00> : vector<10x96xf32>
    %28 = tpu.matmul %26, %27, %cst_11 {dimension_numbers = #tpu.dot_dimension_numbers<[1], [0], [0], [1], [0, 0, 1, 1], [], []>} : vector<10x32xbf16>, vector<32x96xbf16>, vector<10x96xf32> -> vector<10x96xf32>
    %c0_12 = arith.constant 0 : index
    %c0_13 = arith.constant 0 : index
    %29 = vector.load %arg6[%c0_12, %c0_13] : memref<1x96xf32, #tpu.memory_space<vmem>>, vector<1x96xf32>
    %30 = vector.broadcast %29 : vector<1x96xf32> to vector<10x96xf32>
    %31 = arith.addf %28, %30 : vector<10x96xf32>
    %32 = arith.truncf %31 : vector<10x96xf32> to vector<10x96xbf16>
    %c0_14 = arith.constant 0 : index
    %c0_15 = arith.constant 0 : index
    %33 = vector.load %arg7[%c0_14, %c0_15] : memref<10x96xbf16, #tpu.memory_space<vmem>>, vector<10x96xbf16>
    tpu.vector_store %arg7[%c0_14, %c0_15], %32 {strides = array<i32>} : memref<10x96xbf16, #tpu.memory_space<vmem>>, vector<10x96xbf16>,
    return
  }
  func.func @transform_0(%arg0: i32, %arg1: i32) -> (i32, i32) {
    %c0_i32 = arith.constant 0 : i32
    %c0_i32_0 = arith.constant 0 : i32
    return %arg0, %c0_i32 : i32, i32
  }
  func.func @transform_1(%arg0: i32, %arg1: i32) -> (i32, i32) {
    %c0_i32 = arith.constant 0 : i32
    %c0_i32_0 = arith.constant 0 : i32
    %c0_i32_1 = arith.constant 0 : i32
    return %c0_i32, %c0_i32_0 : i32, i32
  }
  func.func @transform_2(%arg0: i32, %arg1: i32) -> (i32, i32) {
    %c0_i32 = arith.constant 0 : i32
    %c0_i32_0 = arith.constant 0 : i32
    %c0_i32_1 = arith.constant 0 : i32
    return %c0_i32, %c0_i32_0 : i32, i32
  }
  func.func @transform_3(%arg0: i32, %arg1: i32) -> (i32, i32) {
    %c0_i32 = arith.constant 0 : i32
    %c0_i32_0 = arith.constant 0 : i32
    return %c0_i32, %arg1 : i32, i32
  }
  func.func @transform_4(%arg0: i32, %arg1: i32) -> (i32, i32) {
    %c0_i32 = arith.constant 0 : i32
    %c0_i32_0 = arith.constant 0 : i32
    return %c0_i32, %arg1 : i32, i32
  }
  func.func @transform_5(%arg0: i32, %arg1: i32) -> (i32, i32) {
    %c0_i32 = arith.constant 0 : i32
    return %arg0, %arg1 : i32, i32
  }
}

module attributes {stable_mosaic.version = 11 : i64} {
  func.func @_ln_swiglu_res_kernel(%arg0: i32, %arg1: i32, %arg2: memref<10x32xbf16, #tpu.memory_space<vmem>>, %arg3: memref<1x32xf32, #tpu.memory_space<vmem>>, %arg4: memref<1x32xf32, #tpu.memory_space<vmem>>, %arg5: memref<32x64xbf16, #tpu.memory_space<vmem>>, %arg6: memref<1x64xf32, #tpu.memory_space<vmem>>, %arg7: memref<32x64xbf16, #tpu.memory_space<vmem>>, %arg8: memref<1x64xf32, #tpu.memory_space<vmem>>, %arg9: memref<64x32xbf16, #tpu.memory_space<vmem>>, %arg10: memref<1x32xf32, #tpu.memory_space<vmem>>, %arg11: memref<1x32xf32, #tpu.memory_space<vmem>>, %arg12: memref<10x32xbf16, #tpu.memory_space<vmem>>, %arg13: memref<10x32xbf16, #tpu.memory_space<vmem>>, %arg14: memref<10x32xbf16, #tpu.memory_space<vmem>>, %arg15: memref<10x32xf32, #tpu.memory_space<vmem>>) attributes {dimension_semantics = [#tpu.dimension_semantics<parallel>, #tpu.dimension_semantics<arbitrary>], iteration_bounds = array<i64: 1, 1>, scalar_prefetch = 0 : i64, scratch_operands = 2 : i64, tpu.core_type = #tpu.core_type<tc>, window_params = [{transform_indices = @transform_0, window_bounds = array<i64: 10, 32>}, {pipeline_mode = #tpu.pipeline_mode<synchronous>, transform_indices = @transform_1, window_bounds = array<i64: 1, 32>}, {pipeline_mode = #tpu.pipeline_mode<synchronous>, transform_indices = @transform_2, window_bounds = array<i64: 1, 32>}, {transform_indices = @transform_3, window_bounds = array<i64: 32, 64>}, {transform_indices = @transform_4, window_bounds = array<i64: 1, 64>}, {transform_indices = @transform_5, window_bounds = array<i64: 32, 64>}, {transform_indices = @transform_6, window_bounds = array<i64: 1, 64>}, {transform_indices = @transform_7, window_bounds = array<i64: 64, 32>}, {pipeline_mode = #tpu.pipeline_mode<synchronous>, transform_indices = @transform_8, window_bounds = array<i64: 1, 32>}, {pipeline_mode = #tpu.pipeline_mode<synchronous>, transform_indices = @transform_9, window_bounds = array<i64: 1, 32>}, {transform_indices = @transform_10, window_bounds = array<i64: 10, 32>}, {transform_indices = @transform_11, window_bounds = array<i64: 10, 32>}]} {
    %c0_i32 = arith.constant 0 : i32
    %0 = arith.cmpi eq, %arg1, %c0_i32 : i32
    %1 = arith.extui %0 : i1 to i32
    %c0_i32_0 = arith.constant 0 : i32
    %2 = arith.cmpi ne, %1, %c0_i32_0 : i32
    scf.if %2 {
      %c0_21 = arith.constant 0 : index
      %c0_22 = arith.constant 0 : index
      %30 = vector.load %arg2[%c0_21, %c0_22] : memref<10x32xbf16, #tpu.memory_space<vmem>>, vector<10x32xbf16>
      %31 = arith.extf %30 : vector<10x32xbf16> to vector<10x32xf32>
      %cst_23 = arith.constant dense<0.000000e+00> : vector<10xf32>
      %32 = vector.multi_reduction <add>, %31, %cst_23 [1] : vector<10x32xf32> to vector<10xf32>
      %33 = vector.shape_cast %32 : vector<10xf32> to vector<10x1xf32>
      %cst_24 = arith.constant 3.200000e+01 : f32
      %34 = vector.broadcast %cst_24 : f32 to vector<10x1xf32>
      %35 = arith.divf %33, %34 : vector<10x1xf32>
      %36 = vector.broadcast %35 : vector<10x1xf32> to vector<10x32xf32>
      %37 = arith.subf %31, %36 : vector<10x32xf32>
      %38 = arith.mulf %37, %37 : vector<10x32xf32>
      %cst_25 = arith.constant dense<0.000000e+00> : vector<10xf32>
      %39 = vector.multi_reduction <add>, %38, %cst_25 [1] : vector<10x32xf32> to vector<10xf32>
      %40 = vector.shape_cast %39 : vector<10xf32> to vector<10x1xf32>
      %cst_26 = arith.constant 3.200000e+01 : f32
      %41 = vector.broadcast %cst_26 : f32 to vector<10x1xf32>
      %42 = arith.divf %40, %41 : vector<10x1xf32>
      %43 = vector.broadcast %35 : vector<10x1xf32> to vector<10x32xf32>
      %44 = arith.subf %31, %43 : vector<10x32xf32>
      %cst_27 = arith.constant 9.99999997E-7 : f32
      %45 = vector.broadcast %cst_27 : f32 to vector<10x1xf32>
      %46 = arith.addf %42, %45 : vector<10x1xf32>
      %47 = math.rsqrt %46 : vector<10x1xf32>
      %48 = vector.broadcast %47 : vector<10x1xf32> to vector<10x32xf32>
      %49 = arith.mulf %44, %48 : vector<10x32xf32>
      %c0_28 = arith.constant 0 : index
      %c0_29 = arith.constant 0 : index
      %50 = vector.load %arg3[%c0_28, %c0_29] : memref<1x32xf32, #tpu.memory_space<vmem>>, vector<1x32xf32>
      %51 = vector.broadcast %50 : vector<1x32xf32> to vector<10x32xf32>
      %52 = arith.mulf %49, %51 : vector<10x32xf32>
      %c0_30 = arith.constant 0 : index
      %c0_31 = arith.constant 0 : index
      %53 = vector.load %arg4[%c0_30, %c0_31] : memref<1x32xf32, #tpu.memory_space<vmem>>, vector<1x32xf32>
      %54 = vector.broadcast %53 : vector<1x32xf32> to vector<10x32xf32>
      %55 = arith.addf %52, %54 : vector<10x32xf32>
      %56 = arith.truncf %55 : vector<10x32xf32> to vector<10x32xbf16>
      %c0_32 = arith.constant 0 : index
      %c0_33 = arith.constant 0 : index
      %57 = vector.load %arg14[%c0_32, %c0_33] : memref<10x32xbf16, #tpu.memory_space<vmem>>, vector<10x32xbf16>
      tpu.vector_store %arg14[%c0_32, %c0_33], %56 {strides = array<i32>} : memref<10x32xbf16, #tpu.memory_space<vmem>>, vector<10x32xbf16>,
      %cst_34 = arith.constant 0.000000e+00 : f32
      %58 = vector.broadcast %cst_34 : f32 to vector<10x32xf32>
      %c0_35 = arith.constant 0 : index
      %c0_36 = arith.constant 0 : index
      %59 = vector.load %arg15[%c0_35, %c0_36] : memref<10x32xf32, #tpu.memory_space<vmem>>, vector<10x32xf32>
      tpu.vector_store %arg15[%c0_35, %c0_36], %58 {strides = array<i32>} : memref<10x32xf32, #tpu.memory_space<vmem>>, vector<10x32xf32>,
    } else {
    }
    %c0 = arith.constant 0 : index
    %c0_1 = arith.constant 0 : index
    %3 = vector.load %arg14[%c0, %c0_1] : memref<10x32xbf16, #tpu.memory_space<vmem>>, vector<10x32xbf16>
    %c0_2 = arith.constant 0 : index
    %c0_3 = arith.constant 0 : index
    %4 = vector.load %arg5[%c0_2, %c0_3] : memref<32x64xbf16, #tpu.memory_space<vmem>>, vector<32x64xbf16>
    %cst = arith.constant dense<0.000000e+00> : vector<10x64xf32>
    %5 = tpu.matmul %3, %4, %cst {dimension_numbers = #tpu.dot_dimension_numbers<[1], [0], [0], [1], [0, 0, 1, 1], [], []>} : vector<10x32xbf16>, vector<32x64xbf16>, vector<10x64xf32> -> vector<10x64xf32>
    %c0_4 = arith.constant 0 : index
    %c0_5 = arith.constant 0 : index
    %6 = vector.load %arg6[%c0_4, %c0_5] : memref<1x64xf32, #tpu.memory_space<vmem>>, vector<1x64xf32>
    %7 = vector.broadcast %6 : vector<1x64xf32> to vector<10x64xf32>
    %8 = arith.addf %5, %7 : vector<10x64xf32>
    %c0_6 = arith.constant 0 : index
    %c0_7 = arith.constant 0 : index
    %9 = vector.load %arg7[%c0_6, %c0_7] : memref<32x64xbf16, #tpu.memory_space<vmem>>, vector<32x64xbf16>
    %cst_8 = arith.constant dense<0.000000e+00> : vector<10x64xf32>
    %10 = tpu.matmul %3, %9, %cst_8 {dimension_numbers = #tpu.dot_dimension_numbers<[1], [0], [0], [1], [0, 0, 1, 1], [], []>} : vector<10x32xbf16>, vector<32x64xbf16>, vector<10x64xf32> -> vector<10x64xf32>
    %c0_9 = arith.constant 0 : index
    %c0_10 = arith.constant 0 : index
    %11 = vector.load %arg8[%c0_9, %c0_10] : memref<1x64xf32, #tpu.memory_space<vmem>>, vector<1x64xf32>
    %12 = vector.broadcast %11 : vector<1x64xf32> to vector<10x64xf32>
    %13 = arith.addf %10, %12 : vector<10x64xf32>
    %14 = arith.negf %8 : vector<10x64xf32>
    %15 = math.exp %14 : vector<10x64xf32>
    %cst_11 = arith.constant 1.000000e+00 : f32
    %16 = vector.broadcast %cst_11 : f32 to vector<10x64xf32>
    %17 = arith.addf %16, %15 : vector<10x64xf32>
    %18 = arith.divf %16, %17 : vector<10x64xf32>
    %19 = arith.mulf %8, %18 : vector<10x64xf32>
    %20 = arith.mulf %19, %13 : vector<10x64xf32>
    %c0_12 = arith.constant 0 : index
    %c0_13 = arith.constant 0 : index
    %21 = vector.load %arg15[%c0_12, %c0_13] : memref<10x32xf32, #tpu.memory_space<vmem>>, vector<10x32xf32>
    %22 = arith.truncf %20 : vector<10x64xf32> to vector<10x64xbf16>
    %c0_14 = arith.constant 0 : index
    %c0_15 = arith.constant 0 : index
    %23 = vector.load %arg9[%c0_14, %c0_15] : memref<64x32xbf16, #tpu.memory_space<vmem>>, vector<64x32xbf16>
    %cst_16 = arith.constant dense<0.000000e+00> : vector<10x32xf32>
    %24 = tpu.matmul %22, %23, %cst_16 {dimension_numbers = #tpu.dot_dimension_numbers<[1], [0], [0], [1], [0, 0, 1, 1], [], []>} : vector<10x64xbf16>, vector<64x32xbf16>, vector<10x32xf32> -> vector<10x32xf32>
    %25 = arith.addf %21, %24 : vector<10x32xf32>
    %c0_17 = arith.constant 0 : index
    %c0_18 = arith.constant 0 : index
    %26 = vector.load %arg15[%c0_17, %c0_18] : memref<10x32xf32, #tpu.memory_space<vmem>>, vector<10x32xf32>
    tpu.vector_store %arg15[%c0_17, %c0_18], %25 {strides = array<i32>} : memref<10x32xf32, #tpu.memory_space<vmem>>, vector<10x32xf32>,
    %c0_i32_19 = arith.constant 0 : i32
    %27 = arith.cmpi eq, %arg1, %c0_i32_19 : i32
    %28 = arith.extui %27 : i1 to i32
    %c0_i32_20 = arith.constant 0 : i32
    %29 = arith.cmpi ne, %28, %c0_i32_20 : i32
    scf.if %29 {
      %c0_21 = arith.constant 0 : index
      %c0_22 = arith.constant 0 : index
      %30 = vector.load %arg12[%c0_21, %c0_22] : memref<10x32xbf16, #tpu.memory_space<vmem>>, vector<10x32xbf16>
      %31 = arith.extf %30 : vector<10x32xbf16> to vector<10x32xf32>
      %c0_23 = arith.constant 0 : index
      %c0_24 = arith.constant 0 : index
      %32 = vector.load %arg11[%c0_23, %c0_24] : memref<1x32xf32, #tpu.memory_space<vmem>>, vector<1x32xf32>
      %c0_25 = arith.constant 0 : index
      %c0_26 = arith.constant 0 : index
      %33 = vector.load %arg15[%c0_25, %c0_26] : memref<10x32xf32, #tpu.memory_space<vmem>>, vector<10x32xf32>
      %c0_27 = arith.constant 0 : index
      %c0_28 = arith.constant 0 : index
      %34 = vector.load %arg10[%c0_27, %c0_28] : memref<1x32xf32, #tpu.memory_space<vmem>>, vector<1x32xf32>
      %35 = vector.broadcast %34 : vector<1x32xf32> to vector<10x32xf32>
      %36 = arith.addf %33, %35 : vector<10x32xf32>
      %37 = vector.broadcast %32 : vector<1x32xf32> to vector<10x32xf32>
      %38 = arith.mulf %37, %36 : vector<10x32xf32>
      %39 = arith.addf %31, %38 : vector<10x32xf32>
      %40 = arith.truncf %39 : vector<10x32xf32> to vector<10x32xbf16>
      %c0_29 = arith.constant 0 : index
      %c0_30 = arith.constant 0 : index
      %41 = vector.load %arg13[%c0_29, %c0_30] : memref<10x32xbf16, #tpu.memory_space<vmem>>, vector<10x32xbf16>
      tpu.vector_store %arg13[%c0_29, %c0_30], %40 {strides = array<i32>} : memref<10x32xbf16, #tpu.memory_space<vmem>>, vector<10x32xbf16>,
    } else {
    }
    return
  }
  func.func @transform_0(%arg0: i32, %arg1: i32) -> (i32, i32) {
    %c0_i32 = arith.constant 0 : i32
    %c0_i32_0 = arith.constant 0 : i32
    return %arg0, %c0_i32 : i32, i32
  }
  func.func @transform_1(%arg0: i32, %arg1: i32) -> (i32, i32) {
    %c0_i32 = arith.constant 0 : i32
    %c0_i32_0 = arith.constant 0 : i32
    %c0_i32_1 = arith.constant 0 : i32
    return %c0_i32, %c0_i32_0 : i32, i32
  }
  func.func @transform_2(%arg0: i32, %arg1: i32) -> (i32, i32) {
    %c0_i32 = arith.constant 0 : i32
    %c0_i32_0 = arith.constant 0 : i32
    %c0_i32_1 = arith.constant 0 : i32
    return %c0_i32, %c0_i32_0 : i32, i32
  }
  func.func @transform_3(%arg0: i32, %arg1: i32) -> (i32, i32) {
    %c0_i32 = arith.constant 0 : i32
    %c0_i32_0 = arith.constant 0 : i32
    return %c0_i32, %arg1 : i32, i32
  }
  func.func @transform_4(%arg0: i32, %arg1: i32) -> (i32, i32) {
    %c0_i32 = arith.constant 0 : i32
    %c0_i32_0 = arith.constant 0 : i32
    return %c0_i32, %arg1 : i32, i32
  }
  func.func @transform_5(%arg0: i32, %arg1: i32) -> (i32, i32) {
    %c0_i32 = arith.constant 0 : i32
    %c0_i32_0 = arith.constant 0 : i32
    return %c0_i32, %arg1 : i32, i32
  }
  func.func @transform_6(%arg0: i32, %arg1: i32) -> (i32, i32) {
    %c0_i32 = arith.constant 0 : i32
    %c0_i32_0 = arith.constant 0 : i32
    return %c0_i32, %arg1 : i32, i32
  }
  func.func @transform_7(%arg0: i32, %arg1: i32) -> (i32, i32) {
    %c0_i32 = arith.constant 0 : i32
    %c0_i32_0 = arith.constant 0 : i32
    return %arg1, %c0_i32 : i32, i32
  }
  func.func @transform_8(%arg0: i32, %arg1: i32) -> (i32, i32) {
    %c0_i32 = arith.constant 0 : i32
    %c0_i32_0 = arith.constant 0 : i32
    %c0_i32_1 = arith.constant 0 : i32
    return %c0_i32, %c0_i32_0 : i32, i32
  }
  func.func @transform_9(%arg0: i32, %arg1: i32) -> (i32, i32) {
    %c0_i32 = arith.constant 0 : i32
    %c0_i32_0 = arith.constant 0 : i32
    %c0_i32_1 = arith.constant 0 : i32
    return %c0_i32, %c0_i32_0 : i32, i32
  }
  func.func @transform_10(%arg0: i32, %arg1: i32) -> (i32, i32) {
    %c0_i32 = arith.constant 0 : i32
    %c0_i32_0 = arith.constant 0 : i32
    return %arg0, %c0_i32 : i32, i32
  }
  func.func @transform_11(%arg0: i32, %arg1: i32) -> (i32, i32) {
    %c0_i32 = arith.constant 0 : i32
    %c0_i32_0 = arith.constant 0 : i32
    return %arg0, %c0_i32 : i32, i32
  }
}

module attributes {stable_mosaic.version = 11 : i64} {
  func.func @_ln_matmul_bias_kernel(%arg0: i32, %arg1: i32, %arg2: memref<10x32xbf16, #tpu.memory_space<vmem>>, %arg3: memref<1x32xf32, #tpu.memory_space<vmem>>, %arg4: memref<1x32xf32, #tpu.memory_space<vmem>>, %arg5: memref<32x24xbf16, #tpu.memory_space<vmem>>, %arg6: memref<1x24xf32, #tpu.memory_space<vmem>>, %arg7: memref<10x24xf32, #tpu.memory_space<vmem>>) attributes {dimension_semantics = [#tpu.dimension_semantics<parallel>, #tpu.dimension_semantics<parallel>], iteration_bounds = array<i64: 1, 1>, scalar_prefetch = 0 : i64, scratch_operands = 0 : i64, tpu.core_type = #tpu.core_type<tc>, window_params = [{transform_indices = @transform_0, window_bounds = array<i64: 10, 32>}, {pipeline_mode = #tpu.pipeline_mode<synchronous>, transform_indices = @transform_1, window_bounds = array<i64: 1, 32>}, {pipeline_mode = #tpu.pipeline_mode<synchronous>, transform_indices = @transform_2, window_bounds = array<i64: 1, 32>}, {transform_indices = @transform_3, window_bounds = array<i64: 32, 24>}, {transform_indices = @transform_4, window_bounds = array<i64: 1, 24>}, {transform_indices = @transform_5, window_bounds = array<i64: 10, 24>}]} {
    %c0 = arith.constant 0 : index
    %c0_0 = arith.constant 0 : index
    %0 = vector.load %arg2[%c0, %c0_0] : memref<10x32xbf16, #tpu.memory_space<vmem>>, vector<10x32xbf16>
    %1 = arith.extf %0 : vector<10x32xbf16> to vector<10x32xf32>
    %cst = arith.constant dense<0.000000e+00> : vector<10xf32>
    %2 = vector.multi_reduction <add>, %1, %cst [1] : vector<10x32xf32> to vector<10xf32>
    %3 = vector.shape_cast %2 : vector<10xf32> to vector<10x1xf32>
    %cst_1 = arith.constant 3.200000e+01 : f32
    %4 = vector.broadcast %cst_1 : f32 to vector<10x1xf32>
    %5 = arith.divf %3, %4 : vector<10x1xf32>
    %6 = vector.broadcast %5 : vector<10x1xf32> to vector<10x32xf32>
    %7 = arith.subf %1, %6 : vector<10x32xf32>
    %8 = arith.mulf %7, %7 : vector<10x32xf32>
    %cst_2 = arith.constant dense<0.000000e+00> : vector<10xf32>
    %9 = vector.multi_reduction <add>, %8, %cst_2 [1] : vector<10x32xf32> to vector<10xf32>
    %10 = vector.shape_cast %9 : vector<10xf32> to vector<10x1xf32>
    %cst_3 = arith.constant 3.200000e+01 : f32
    %11 = vector.broadcast %cst_3 : f32 to vector<10x1xf32>
    %12 = arith.divf %10, %11 : vector<10x1xf32>
    %13 = vector.broadcast %5 : vector<10x1xf32> to vector<10x32xf32>
    %14 = arith.subf %1, %13 : vector<10x32xf32>
    %cst_4 = arith.constant 9.99999997E-7 : f32
    %15 = vector.broadcast %cst_4 : f32 to vector<10x1xf32>
    %16 = arith.addf %12, %15 : vector<10x1xf32>
    %17 = math.rsqrt %16 : vector<10x1xf32>
    %18 = vector.broadcast %17 : vector<10x1xf32> to vector<10x32xf32>
    %19 = arith.mulf %14, %18 : vector<10x32xf32>
    %c0_5 = arith.constant 0 : index
    %c0_6 = arith.constant 0 : index
    %20 = vector.load %arg3[%c0_5, %c0_6] : memref<1x32xf32, #tpu.memory_space<vmem>>, vector<1x32xf32>
    %21 = vector.broadcast %20 : vector<1x32xf32> to vector<10x32xf32>
    %22 = arith.mulf %19, %21 : vector<10x32xf32>
    %c0_7 = arith.constant 0 : index
    %c0_8 = arith.constant 0 : index
    %23 = vector.load %arg4[%c0_7, %c0_8] : memref<1x32xf32, #tpu.memory_space<vmem>>, vector<1x32xf32>
    %24 = vector.broadcast %23 : vector<1x32xf32> to vector<10x32xf32>
    %25 = arith.addf %22, %24 : vector<10x32xf32>
    %26 = arith.truncf %25 : vector<10x32xf32> to vector<10x32xbf16>
    %c0_9 = arith.constant 0 : index
    %c0_10 = arith.constant 0 : index
    %27 = vector.load %arg5[%c0_9, %c0_10] : memref<32x24xbf16, #tpu.memory_space<vmem>>, vector<32x24xbf16>
    %cst_11 = arith.constant dense<0.000000e+00> : vector<10x24xf32>
    %28 = tpu.matmul %26, %27, %cst_11 {dimension_numbers = #tpu.dot_dimension_numbers<[1], [0], [0], [1], [0, 0, 1, 1], [], []>} : vector<10x32xbf16>, vector<32x24xbf16>, vector<10x24xf32> -> vector<10x24xf32>
    %c0_12 = arith.constant 0 : index
    %c0_13 = arith.constant 0 : index
    %29 = vector.load %arg6[%c0_12, %c0_13] : memref<1x24xf32, #tpu.memory_space<vmem>>, vector<1x24xf32>
    %30 = vector.broadcast %29 : vector<1x24xf32> to vector<10x24xf32>
    %31 = arith.addf %28, %30 : vector<10x24xf32>
    %c0_14 = arith.constant 0 : index
    %c0_15 = arith.constant 0 : index
    %32 = vector.load %arg7[%c0_14, %c0_15] : memref<10x24xf32, #tpu.memory_space<vmem>>, vector<10x24xf32>
    tpu.vector_store %arg7[%c0_14, %c0_15], %31 {strides = array<i32>} : memref<10x24xf32, #tpu.memory_space<vmem>>, vector<10x24xf32>,
    return
  }
  func.func @transform_0(%arg0: i32, %arg1: i32) -> (i32, i32) {
    %c0_i32 = arith.constant 0 : i32
    %c0_i32_0 = arith.constant 0 : i32
    return %arg0, %c0_i32 : i32, i32
  }
  func.func @transform_1(%arg0: i32, %arg1: i32) -> (i32, i32) {
    %c0_i32 = arith.constant 0 : i32
    %c0_i32_0 = arith.constant 0 : i32
    %c0_i32_1 = arith.constant 0 : i32
    return %c0_i32, %c0_i32_0 : i32, i32
  }
  func.func @transform_2(%arg0: i32, %arg1: i32) -> (i32, i32) {
    %c0_i32 = arith.constant 0 : i32
    %c0_i32_0 = arith.constant 0 : i32
    %c0_i32_1 = arith.constant 0 : i32
    return %c0_i32, %c0_i32_0 : i32, i32
  }
  func.func @transform_3(%arg0: i32, %arg1: i32) -> (i32, i32) {
    %c0_i32 = arith.constant 0 : i32
    %c0_i32_0 = arith.constant 0 : i32
    return %c0_i32, %arg1 : i32, i32
  }
  func.func @transform_4(%arg0: i32, %arg1: i32) -> (i32, i32) {
    %c0_i32 = arith.constant 0 : i32
    %c0_i32_0 = arith.constant 0 : i32
    return %c0_i32, %arg1 : i32, i32
  }
  func.func @transform_5(%arg0: i32, %arg1: i32) -> (i32, i32) {
    %c0_i32 = arith.constant 0 : i32
    return %arg0, %arg1 : i32, i32
  }
}

</mosaic_0001>

<llo_original>
// kernel: frozen_dinov2_encoder_forward.13
$region0: #{frozen_dinov2_encoder_forward.13}
  #allocation0 [shape = 'u32[]', space=smem, size = 0x4, offset = 0x4, fixed_abs, tag = 'smem constant byte address 0x4 - core index']
  #allocation1 [shape = 'u32[144,128]{1,0:T(1,128)}', space=vmem, size = 0x12000, scoped, tag = 'internal scratch']
  %s0 = inlined_call_operand.vmem [shape: bf16[10,32], index: 0, kind: input, shape index: {}]
  %s1 = inlined_call_operand.vmem [shape: bf16[32,32], index: 1, kind: input, shape index: {}]
  %s2 = inlined_call_operand.vmem [shape: f32[1,32], index: 2, kind: input, shape index: {}]
  %s3 = inlined_call_operand.vmem [shape: f32[1,32], index: 3, kind: input, shape index: {}]
  %s4 = inlined_call_operand.vmem [shape: bf16[10,32], index: 4, kind: input, shape index: {}]
  %s5 = inlined_call_operand.vmem [shape: bf16[10,32], index: 5, kind: output, shape index: {}]
  %s6 = sld [smem:[#allocation0]]
  $region30: #{frozen_dinov2_encoder_forward.13} parent=0
    _
  %s8 = ssub.s32 1, %s6
  %s9 = scalar_select 0, %s8, %s6
  // Predicated region
  $region2: #{frozen_dinov2_encoder_forward.13} parent=0 // pred_check
    _
  $region3: #{frozen_dinov2_encoder_forward.13} parent=0 // pred_check_branch
    %11 = sbr.rel (0) target = $region5
  $region4: #{frozen_dinov2_encoder_forward.13} parent=0 // pred_region
    _
  $region5: #{frozen_dinov2_encoder_forward.13} parent=0 // pred_fallthru
    _
  // Predicated region
  $region6: #{frozen_dinov2_encoder_forward.13} parent=0 // pred_check
    _
  $region7: #{frozen_dinov2_encoder_forward.13} parent=0 // pred_check_branch
    %13 = sbr.rel (0) target = $region9
  $region8: #{frozen_dinov2_encoder_forward.13} parent=0 // pred_region
    _
  $region9: #{frozen_dinov2_encoder_forward.13} parent=0 // pred_fallthru
    _
  // Predicated region
  $region10: #{frozen_dinov2_encoder_forward.13} parent=0 // pred_check
    _
  $region11: #{frozen_dinov2_encoder_forward.13} parent=0 // pred_check_branch
    %15 = sbr.rel (0) target = $region13
  $region12: #{frozen_dinov2_encoder_forward.13} parent=0 // pred_region
    _
  $region13: #{frozen_dinov2_encoder_forward.13} parent=0 // pred_fallthru
    _
  // Predicated region
  $region14: #{frozen_dinov2_encoder_forward.13} parent=0 // pred_check
    _
  $region15: #{frozen_dinov2_encoder_forward.13} parent=0 // pred_check_branch
    %17 = sbr.rel (0) target = $region17
  $region16: #{frozen_dinov2_encoder_forward.13} parent=0 // pred_region
    _
  $region17: #{frozen_dinov2_encoder_forward.13} parent=0 // pred_fallthru
    _
  // Predicated region
  $region18: #{frozen_dinov2_encoder_forward.13} parent=0 // pred_check
    _
  $region19: #{frozen_dinov2_encoder_forward.13} parent=0 // pred_check_branch
    %19 = sbr.rel (0) target = $region21
  $region20: #{frozen_dinov2_encoder_forward.13} parent=0 // pred_region
    _
  $region21: #{frozen_dinov2_encoder_forward.13} parent=0 // pred_fallthru
    _
  %v21 = vld [vmem:[%s0] sm:$0xf]
  %v22 = vld [vmem:[%s0 + $0x4] sm:$0x1]
  %v23 = vld [vmem:[%s1] sm:$0xf]
  %v24 = vld [vmem:[%s1 + $0x4] sm:$0xf]
  %v25 = vld [vmem:[%s1 + $0x8] sm:$0xf]
  %v26 = vld [vmem:[%s1 + $0xc] sm:$0xf]
  %v27 = vld [vmem:[%s4] sm:$0xf]
  %v28 = vld [vmem:[%s4 + $0x4] sm:$0x1]
  %v29 = vunpack.c.l.bf16 %v27
  %v30 = vunpack.c.l.bf16 %v28
  %v31 = vld [vmem:[%s3] sm:$0x1]
  %v32 = vld [vmem:[%s2] sm:$0x1]
  %v34 = vlaneseq
  %v35 = vshrl.u32 %v34, 7
  %v36 = vsub.s32 0, %v35
  %v37 = vrot.slane %v32, %v36
  %v41 = vunpack.c.l.b16 %v21
  %v42 = vunpack.c.l.b16 %v22
  %v43 = vpack.c.b16 %v42, %v41
  %v48 = vunpack.c.l.b16 %v23
  %v49 = vunpack.c.l.b16 %v24
  %v50 = vunpack.c.l.b16 %v25
  %v51 = vunpack.c.l.b16 %v26
  %v52 = vpack.c.b16 %v49, %v48
  %v53 = vpack.c.b16 %v51, %v50
  %vm56 = vcmask 261120
  %v58 = vsel %vm56, %v43, 0
  %60 = vmatprep.subr.bf16.mxu0 0
  %61 = vmatpush1.bf16.msra.mxu0 %v52
  %62 = vmatprep.subr.bf16.mxu0 0
  %63 = vmatpush1.bf16.msra.mxu0 %v53
  %64 = vmatprep.subr.bf16.mxu0 0
  %65 = vmatpush1.bf16.msra.mxu0 0
  %66 = vmatprep.subr.bf16.mxu0 0
  %67 = vmatpush1.bf16.msra.mxu0 0
  %68 = vmatprep.subr.bf16.mxu0 0
  %69 = vmatpush1.bf16.msra.mxu0 0
  %70 = vmatprep.subr.bf16.mxu0 0
  %71 = vmatpush1.bf16.msra.mxu0 0
  %72 = vmatprep.subr.bf16.mxu0 0
  %73 = vmatpush1.bf16.msra.mxu0 0
  %74 = vmatprep.subr.bf16.mxu0 0
  %75 = vmatpush1.bf16.msra.mxu0 0
  %76 = vmatprep.subr.bf16.mxu0 0
  %77 = vmatpush1.bf16.msra.mxu0 0
  %78 = vmatprep.subr.bf16.mxu0 0
  %79 = vmatpush1.bf16.msra.mxu0 0
  %80 = vmatprep.subr.bf16.mxu0 0
  %81 = vmatpush1.bf16.msra.mxu0 0
  %82 = vmatprep.subr.bf16.mxu0 0
  %83 = vmatpush1.bf16.msra.mxu0 0
  %84 = vmatprep.subr.bf16.mxu0 0
  %85 = vmatpush1.bf16.msra.mxu0 0
  %86 = vmatprep.subr.bf16.mxu0 0
  %87 = vmatpush1.bf16.msra.mxu0 0
  %88 = vmatprep.subr.bf16.mxu0 0
  %89 = vmatpush1.bf16.msra.mxu0 0
  %90 = vmatprep.subr.bf16.mxu0 0
  %91 = vmatpush1.bf16.msra.mxu0 0
  %92 = vmatprep.mubr.bf16.mxu0 0
  %93 = vmatmul.mubr.bf16.gmra.mrb[0].mxu0 %v58
  %v94 = vpop.f32.mrb[0].mxu0
  %v95 = vadd.f32 %v37, %v94
  %v96 = vpop.f32.mrb[0].mxu0
  %v97 = vpop.f32.mrb[0].mxu0
  %v98 = vadd.f32 %v37, %v97
  %v99 = vpop.f32.mrb[0].mxu0
  %100 = vdwg.mxu0
  %v102 = vlaneseq
  %v103 = vshrl.u32 %v102, 7
  %v104 = vsub.s32 0, %v103
  %v105 = vrot.slane %v31, %v104
  %v107 = vmul.f32 %v105, %v95
  %v108 = vmul.f32 %v105, %v98
  %v109 = vadd.f32 %v29, %v107
  %v110 = vadd.f32 %v30, %v108
  %v111 = vpack.c.bf16 %v110, %v109
  %v113 = vunpack.c.l.b16 %v111
  %v114 = vunpack.c.h.b16 %v111
  %v115 = vpack.c.b16 %v113, %v113
  %v116 = vpack.c.b16 %v114, %v114
  %vm119 = vcmask 257024
  %120 = vst.msk [vmem:[%s5] sm:$0xf] %vm119, %v115
  %vm121 = vcmask 253952
  %122 = vst.msk [vmem:[%s5 + $0x4] sm:$0x1] %vm121, %v116
  // Predicated region
  $region22: #{frozen_dinov2_encoder_forward.13} parent=0 // pred_check
    _
  $region23: #{frozen_dinov2_encoder_forward.13} parent=0 // pred_check_branch
    %124 = sbr.rel (0) target = $region25
  $region24: #{frozen_dinov2_encoder_forward.13} parent=0 // pred_region
    _
  $region25: #{frozen_dinov2_encoder_forward.13} parent=0 // pred_fallthru
    _
  // Predicated region
  $region26: #{frozen_dinov2_encoder_forward.13} parent=0 // pred_check
    _
  $region27: #{frozen_dinov2_encoder_forward.13} parent=0 // pred_check_branch
    %126 = sbr.rel (0) target = $region29
  $region28: #{frozen_dinov2_encoder_forward.13} parent=0 // pred_region
    _
  $region29: #{frozen_dinov2_encoder_forward.13} parent=0 // pred_fallthru
    _

// kernel: frozen_dinov2_encoder_forward.10
$region0: #{frozen_dinov2_encoder_forward.10}
  #allocation0 [shape = 'u32[]', space=smem, size = 0x4, offset = 0x4, fixed_abs, tag = 'smem constant byte address 0x4 - core index']
  #allocation1 [shape = 'u32[144,128]{1,0:T(1,128)}', space=vmem, size = 0x12000, scoped, tag = 'internal scratch']
  %s0 = inlined_call_operand.vmem [shape: bf16[8,192], index: 0, kind: input, shape index: {}]
  %s1 = inlined_call_operand.vmem [shape: bf16[192,32], index: 1, kind: input, shape index: {}]
  %s2 = inlined_call_operand.vmem [shape: f32[1,32], index: 2, kind: input, shape index: {}]
  %s3 = inlined_call_operand.vmem [shape: bf16[8,32], index: 3, kind: output, shape index: {}]
  %s4 = sld [smem:[#allocation0]]
  $region22: #{frozen_dinov2_encoder_forward.10} parent=0
    _
  %s6 = ssub.s32 1, %s4
  %s7 = scalar_select 0, %s6, %s4
  // Predicated region
  $region2: #{frozen_dinov2_encoder_forward.10} parent=0 // pred_check
    _
  $region3: #{frozen_dinov2_encoder_forward.10} parent=0 // pred_check_branch
    %9 = sbr.rel (0) target = $region5
  $region4: #{frozen_dinov2_encoder_forward.10} parent=0 // pred_region
    _
  $region5: #{frozen_dinov2_encoder_forward.10} parent=0 // pred_fallthru
    _
  // Predicated region
  $region6: #{frozen_dinov2_encoder_forward.10} parent=0 // pred_check
    _
  $region7: #{frozen_dinov2_encoder_forward.10} parent=0 // pred_check_branch
    %11 = sbr.rel (0) target = $region9
  $region8: #{frozen_dinov2_encoder_forward.10} parent=0 // pred_region
    _
  $region9: #{frozen_dinov2_encoder_forward.10} parent=0 // pred_fallthru
    _
  // Predicated region
  $region10: #{frozen_dinov2_encoder_forward.10} parent=0 // pred_check
    _
  $region11: #{frozen_dinov2_encoder_forward.10} parent=0 // pred_check_branch
    %13 = sbr.rel (0) target = $region13
  $region12: #{frozen_dinov2_encoder_forward.10} parent=0 // pred_region
    _
  $region13: #{frozen_dinov2_encoder_forward.10} parent=0 // pred_fallthru
    _
  %v15 = vld [vmem:[%s0] sm:$0xff]
  %v16 = vld [vmem:[%s1] sm:$0xf]
  %v17 = vld [vmem:[%s1 + $0x4] sm:$0xf]
  %v18 = vld [vmem:[%s1 + $0x8] sm:$0xf]
  %v19 = vld [vmem:[%s1 + $0xc] sm:$0xf]
  %v20 = vld [vmem:[%s1 + $0x10] sm:$0xf]
  %v21 = vld [vmem:[%s1 + $0x14] sm:$0xf]
  %v22 = vld [vmem:[%s1 + $0x18] sm:$0xf]
  %v23 = vld [vmem:[%s1 + $0x1c] sm:$0xf]
  %v24 = vld [vmem:[%s1 + $0x20] sm:$0xf]
  %v25 = vld [vmem:[%s1 + $0x24] sm:$0xf]
  %v26 = vld [vmem:[%s1 + $0x28] sm:$0xf]
  %v27 = vld [vmem:[%s1 + $0x2c] sm:$0xf]
  %v28 = vld [vmem:[%s1 + $0x30] sm:$0xf]
  %v29 = vld [vmem:[%s1 + $0x34] sm:$0xf]
  %v30 = vld [vmem:[%s1 + $0x38] sm:$0xf]
  %v31 = vld [vmem:[%s1 + $0x3c] sm:$0xf]
  %v32 = vld [vmem:[%s1 + $0x40] sm:$0xf]
  %v33 = vld [vmem:[%s1 + $0x44] sm:$0xf]
  %v34 = vld [vmem:[%s1 + $0x48] sm:$0xf]
  %v35 = vld [vmem:[%s1 + $0x4c] sm:$0xf]
  %v36 = vld [vmem:[%s1 + $0x50] sm:$0xf]
  %v37 = vld [vmem:[%s1 + $0x54] sm:$0xf]
  %v38 = vld [vmem:[%s1 + $0x58] sm:$0xf]
  %v39 = vld [vmem:[%s1 + $0x5c] sm:$0xf]
  %v40 = vld [vmem:[%s2] sm:$0x1]
  %v42 = vlaneseq
  %v43 = vshrl.u32 %v42, 7
  %v44 = vsub.s32 0, %v43
  %v45 = vrot.slane %v40, %v44
  %v48 = vunpack.c.l.b16 %v15
  %v49 = vunpack.c.h.b16 %v15
  %v50 = vpack.c.b16 %v48, %v48
  %v51 = vpack.c.b16 %v49, %v49
  %v77 = vunpack.c.l.b16 %v16
  %v78 = vunpack.c.l.b16 %v17
  %v79 = vunpack.c.l.b16 %v18
  %v80 = vunpack.c.l.b16 %v19
  %v81 = vunpack.c.l.b16 %v20
  %v82 = vunpack.c.l.b16 %v21
  %v83 = vunpack.c.l.b16 %v22
  %v84 = vunpack.c.l.b16 %v23
  %v85 = vunpack.c.l.b16 %v24
  %v86 = vunpack.c.l.b16 %v25
  %v87 = vunpack.c.l.b16 %v26
  %v88 = vunpack.c.l.b16 %v27
  %v89 = vunpack.c.l.b16 %v28
  %v90 = vunpack.c.l.b16 %v29
  %v91 = vunpack.c.l.b16 %v30
  %v92 = vunpack.c.l.b16 %v31
  %v93 = vunpack.c.l.b16 %v32
  %v94 = vunpack.c.l.b16 %v33
  %v95 = vunpack.c.l.b16 %v34
  %v96 = vunpack.c.l.b16 %v35
  %v97 = vunpack.c.l.b16 %v36
  %v98 = vunpack.c.l.b16 %v37
  %v99 = vunpack.c.l.b16 %v38
  %v100 = vunpack.c.l.b16 %v39
  %v101 = vpack.c.b16 %v78, %v77
  %v102 = vpack.c.b16 %v80, %v79
  %v103 = vpack.c.b16 %v82, %v81
  %v104 = vpack.c.b16 %v84, %v83
  %v105 = vpack.c.b16 %v86, %v85
  %v106 = vpack.c.b16 %v88, %v87
  %v107 = vpack.c.b16 %v90, %v89
  %v108 = vpack.c.b16 %v92, %v91
  %v109 = vpack.c.b16 %v94, %v93
  %v110 = vpack.c.b16 %v96, %v95
  %v111 = vpack.c.b16 %v98, %v97
  %v112 = vpack.c.b16 %v100, %v99
  %vm125 = vcmask 523264
  %v127 = vsel %vm125, %v51, 0
  %129 = vmatprep.subr.bf16.mxu0 0
  %130 = vmatpush1.bf16.msra.mxu0 %v101
  %131 = vmatprep.subr.bf16.mxu0 0
  %132 = vmatpush1.bf16.msra.mxu0 %v102
  %133 = vmatprep.subr.bf16.mxu0 0
  %134 = vmatpush1.bf16.msra.mxu0 %v103
  %135 = vmatprep.subr.bf16.mxu0 0
  %136 = vmatpush1.bf16.msra.mxu0 %v104
  %137 = vmatprep.subr.bf16.mxu0 0
  %138 = vmatpush1.bf16.msra.mxu0 %v105
  %139 = vmatprep.subr.bf16.mxu0 0
  %140 = vmatpush1.bf16.msra.mxu0 %v106
  %141 = vmatprep.subr.bf16.mxu0 0
  %142 = vmatpush1.bf16.msra.mxu0 %v107
  %143 = vmatprep.subr.bf16.mxu0 0
  %144 = vmatpush1.bf16.msra.mxu0 %v108
  %145 = vmatprep.subr.bf16.mxu0 0
  %146 = vmatpush1.bf16.msra.mxu0 %v109
  %147 = vmatprep.subr.bf16.mxu0 0
  %148 = vmatpush1.bf16.msra.mxu0 %v110
  %149 = vmatprep.subr.bf16.mxu0 0
  %150 = vmatpush1.bf16.msra.mxu0 %v111
  %151 = vmatprep.subr.bf16.mxu0 0
  %152 = vmatpush1.bf16.msra.mxu0 %v112
  %153 = vmatprep.subr.bf16.mxu0 0
  %154 = vmatpush1.bf16.msra.mxu0 0
  %155 = vmatprep.subr.bf16.mxu0 0
  %156 = vmatpush1.bf16.msra.mxu0 0
  %157 = vmatprep.subr.bf16.mxu0 0
  %158 = vmatpush1.bf16.msra.mxu0 0
  %159 = vmatprep.subr.bf16.mxu0 0
  %160 = vmatpush1.bf16.msra.mxu0 0
  %161 = vmatprep.mubr.bf16.mxu0 %v127
  %162 = vmatmul.mubr.bf16.gmra.mrb[0].mxu0 %v50
  %v163 = vpop.f32.mrb[0].mxu0
  %v164 = vadd.f32 %v45, %v163
  %v165 = vpop.f32.mrb[0].mxu0
  %v166 = vpop.f32.mrb[0].mxu0
  %v167 = vpop.f32.mrb[0].mxu0
  %168 = vdwg.mxu0
  %v169 = vpack.c.bf16 %v164, %v164
  %vm170 = vcmask 257024
  %171 = vst.msk [vmem:[%s3] sm:$0xf] %vm170, %v169
  // Predicated region
  $region14: #{frozen_dinov2_encoder_forward.10} parent=0 // pred_check
    _
  $region15: #{frozen_dinov2_encoder_forward.10} parent=0 // pred_check_branch
    %173 = sbr.rel (0) target = $region17
  $region16: #{frozen_dinov2_encoder_forward.10} parent=0 // pred_region
    _
  $region17: #{frozen_dinov2_encoder_forward.10} parent=0 // pred_fallthru
    _
  // Predicated region
  $region18: #{frozen_dinov2_encoder_forward.10} parent=0 // pred_check
    _
  $region19: #{frozen_dinov2_encoder_forward.10} parent=0 // pred_check_branch
    %175 = sbr.rel (0) target = $region21
  $region20: #{frozen_dinov2_encoder_forward.10} parent=0 // pred_region
    _
  $region21: #{frozen_dinov2_encoder_forward.10} parent=0 // pred_fallthru
    _

// kernel: frozen_dinov2_encoder_forward.12
$region0: #{frozen_dinov2_encoder_forward.12}
  #allocation0 [shape = 'u32[]', space=smem, size = 0x4, offset = 0x4, fixed_abs, tag = 'smem constant byte address 0x4 - core index']
  #allocation1 [shape = 'u32[144,128]{1,0:T(1,128)}', space=vmem, size = 0x12000, scoped, tag = 'internal scratch']
  %s0 = inlined_call_operand.vmem [shape: bf16[2,5,96], index: 0, kind: input, shape index: {}]
  %s1 = inlined_call_operand.vmem [shape: bf16[2,5,32], index: 1, kind: output, shape index: {}]
  %s2 = sld [smem:[#allocation0]]
  $region37: #{frozen_dinov2_encoder_forward.12} parent=0
    _
  %s4 = ssub.s32 1, %s2
  %s5 = scalar_select 0, %s4, %s2
  loop: start=0, step=1, limit=4
  $region2: #{frozen_dinov2_encoder_forward.12} parent=0 // loop_pre_header
    _
  $region3: #{frozen_dinov2_encoder_forward.12} parent=0 // loop_header
    %s7 = sphi 0, %s11
    %p8 = scmp.ge.s32.totalorder %s7, 4
    %s17 = sphi 0, %s19
    %s20 = sphi 0, %s17
    %s21 = sphi 0, %s20
    %s37 = sphi 0, %s21
    %s43 = sphi 0, %s45
    %s46 = sphi 0, %s43
    %s47 = sphi 0, %s46
    %s63 = sphi 0, %s47
  $region4: #{frozen_dinov2_encoder_forward.12} parent=0 // loop_header_branch
    %10 = sbr.rel (%p8) target = $region8
  $region5: #{frozen_dinov2_encoder_forward.12} parent=0 // loop_body
    %s12 = ssub.s32 %s7, 1
    %s13 = ssub.s32 %s7, 2
    %s14 = sadd.s32 %s7, 1
    %s15 = ssub.s32 %s7, %s14
    %p16 = scmp.eq.s32.totalorder %s15, 0
    %s18 = sadd.s32 %s17, 1
    %s19 = scalar_select %p16, %s17, %s18
    %p22 = pneg %p16
    %p23 = scmp.eq.s32.totalorder %s7, 1
    %p24 = por %p22, %p23
    %p25 = scmp.ne.s32.totalorder %s17, %s20
    %p26 = scmp.eq.s32.totalorder %s7, 0
    %p27 = por %p25, %p26
    %p28 = scmp.ne.s32.totalorder %s17, %s20
    %p29 = scmp.eq.s32.totalorder %s12, 1
    %p30 = por %p28, %p29
    %p31 = scmp.ne.s32.totalorder %s20, %s21
    %p32 = scmp.eq.s32.totalorder %s12, 0
    %p33 = por %p31, %p32
    %p34 = scmp.ne.s32.totalorder %s20, %s21
    %p35 = scmp.eq.s32.totalorder %s13, 1
    %p36 = por %p34, %p35
    %p38 = scmp.ne.s32.totalorder %s21, %s37
    %p39 = scmp.eq.s32.totalorder %s13, 0
    %p40 = por %p38, %p39
    %s41 = ssub.s32 %s7, %s14
    %p42 = scmp.eq.s32.totalorder %s41, 0
    %s44 = sadd.s32 %s43, 1
    %s45 = scalar_select %p42, %s43, %s44
    %p48 = pneg %p42
    %p49 = scmp.eq.s32.totalorder %s7, 1
    %p50 = por %p48, %p49
    %p51 = scmp.ne.s32.totalorder %s43, %s46
    %p52 = scmp.eq.s32.totalorder %s7, 0
    %p53 = por %p51, %p52
    %p54 = scmp.ne.s32.totalorder %s43, %s46
    %p55 = scmp.eq.s32.totalorder %s12, 1
    %p56 = por %p54, %p55
    %p57 = scmp.ne.s32.totalorder %s46, %s47
    %p58 = scmp.eq.s32.totalorder %s12, 0
    %p59 = por %p57, %p58
    %p60 = scmp.ne.s32.totalorder %s46, %s47
    %p61 = scmp.eq.s32.totalorder %s13, 1
    %p62 = por %p60, %p61
    %p64 = scmp.ne.s32.totalorder %s47, %s63
    %p65 = scmp.eq.s32.totalorder %s13, 0
    %p66 = por %p64, %p65
    %p67 = scmp.le.s32.totalorder 1, %s7
    %p68 = scmp.lt.s32.totalorder %s7, 3
    %p69 = pnand %p67, %p68
    %p70 = pneg %p69
    // Predicated region
    $region9: #{frozen_dinov2_encoder_forward.12} parent=5 // pred_check
      _
    $region10: #{frozen_dinov2_encoder_forward.12} parent=5 // pred_check_branch
      %72 = sbr.rel (%p69) target = $region12
    $region11: #{frozen_dinov2_encoder_forward.12} parent=5 // pred_region
      %s73 = ssub.s32 %s7, 1
    $region12: #{frozen_dinov2_encoder_forward.12} parent=5 // pred_fallthru
      _
    %p74 = scmp.lt.s32.totalorder %s7, 2
    // Predicated region
    $region13: #{frozen_dinov2_encoder_forward.12} parent=5 // pred_check
      %p75 = pneg %p74
    $region14: #{frozen_dinov2_encoder_forward.12} parent=5 // pred_check_branch
      %77 = sbr.rel (%p75) target = $region16
    $region15: #{frozen_dinov2_encoder_forward.12} parent=5 // pred_region
      // Predicated region
      $region17: #{frozen_dinov2_encoder_forward.12} parent=15 // pred_check
        %p78 = pneg %p27
      $region18: #{frozen_dinov2_encoder_forward.12} parent=15 // pred_check_branch
        %80 = sbr.rel (%p78) target = $region20
      $region19: #{frozen_dinov2_encoder_forward.12} parent=15 // pred_region
        %p81 = scmp.lt.s32.totalorder %s7, 1
        %s82 = scalar_select %p81, %s7, 1
        %s83 = smul.addr %s82, 4
        %s84 = scalar_lea.vmem %s0, %s83
      $region20: #{frozen_dinov2_encoder_forward.12} parent=15 // pred_fallthru
        _
    $region16: #{frozen_dinov2_encoder_forward.12} parent=5 // pred_fallthru
      _
    %p85 = scmp.le.s32.totalorder 1, %s7
    %p86 = scmp.lt.s32.totalorder %s7, 3
    %p87 = pnand %p85, %p86
    %p88 = pneg %p87
    // Predicated region
    $region21: #{frozen_dinov2_encoder_forward.12} parent=5 // pred_check
      _
    $region22: #{frozen_dinov2_encoder_forward.12} parent=5 // pred_check_branch
      %90 = sbr.rel (%p87) target = $region24
    $region23: #{frozen_dinov2_encoder_forward.12} parent=5 // pred_region
      %s91 = ssub.s32 %s7, 1
      %p92 = scmp.lt.s32.totalorder %s12, 1
      %s93 = scalar_select %p92, %s12, 1
      %s94 = smul.addr %s93, 4
      %s95 = scalar_lea.vmem %s0, %s94
      %p96 = pneg %p33
      %p97 = pneg %p30
      %p98 = pneg %p59
      %p99 = pneg %p56
      %p100 = scmp.lt.s32.totalorder %s12, 1
      %s101 = scalar_select %p100, %s12, 1
      %s102 = smul.addr %s101, 4
      %s103 = scalar_lea.vmem %s1, %s102
      %p104 = scmp.lt.s32.totalorder %s12, 1
      %s105 = scalar_select %p104, %s12, 1
      %s106 = smul.addr %s105, 4
      %s107 = scalar_lea.vmem %s0, %s106
      %p108 = scmp.lt.s32.totalorder %s12, 1
      %s109 = scalar_select %p108, %s12, 1
      %s110 = smul.addr %s109, 4
      %s111 = scalar_lea.vmem %s1, %s110
      %v113 = vld [vmem:[%s107] sm:$0x7]
      %v115 = vunpack.c.l.b16 %v113
      %v116 = vpack.c.b16 %v115, %v115
      %117 = vrot.lane.b32.xlu0 %v116, 96
      %v118 = vpop.permute.xlu0 %117
      %vm119 = vcmask 130048
      %v121 = vsel %vm119, %v113, 0
      %v124 = vsel %vm119, %v118, 0
      %126 = vmatprep.subr.bf16.mxu0 0
      %127 = vmatpush1.bf16.xpose.msra.mxu0 %v124
      %128 = vmatprep.subr.bf16.mxu0 0
      %129 = vmatpush1.bf16.xpose.msra.mxu0 0
      %130 = vmatprep.subr.bf16.mxu0 0
      %131 = vmatpush1.bf16.xpose.msra.mxu0 0
      %132 = vmatprep.subr.bf16.mxu0 0
      %133 = vmatpush1.bf16.xpose.msra.mxu0 0
      %134 = vmatprep.subr.bf16.mxu0 0
      %135 = vmatpush1.bf16.xpose.msra.mxu0 0
      %136 = vmatprep.subr.bf16.mxu0 0
      %137 = vmatpush1.bf16.xpose.msra.mxu0 0
      %138 = vmatprep.subr.bf16.mxu0 0
      %139 = vmatpush1.bf16.xpose.msra.mxu0 0
      %140 = vmatprep.subr.bf16.mxu0 0
      %141 = vmatpush1.bf16.xpose.msra.mxu0 0
      %142 = vmatprep.subr.bf16.mxu0 0
      %143 = vmatpush1.bf16.xpose.msra.mxu0 0
      %144 = vmatprep.subr.bf16.mxu0 0
      %145 = vmatpush1.bf16.xpose.msra.mxu0 0
      %146 = vmatprep.subr.bf16.mxu0 0
      %147 = vmatpush1.bf16.xpose.msra.mxu0 0
      %148 = vmatprep.subr.bf16.mxu0 0
      %149 = vmatpush1.bf16.xpose.msra.mxu0 0
      %150 = vmatprep.subr.bf16.mxu0 0
      %151 = vmatpush1.bf16.xpose.msra.mxu0 0
      %152 = vmatprep.subr.bf16.mxu0 0
      %153 = vmatpush1.bf16.xpose.msra.mxu0 0
      %154 = vmatprep.subr.bf16.mxu0 0
      %155 = vmatpush1.bf16.xpose.msra.mxu0 0
      %156 = vmatprep.subr.bf16.mxu0 0
      %157 = vmatpush1.bf16.xpose.msra.mxu0 0
      %158 = vmatprep.mubr.bf16.mxu0 0
      %159 = vmatmul.mubr.bf16.gmra.mrb[0].mxu0 %v121
      %v160 = vpop.f32.mrb[0].mxu0
      %v161 = vadd.f32 0.0, %v160
      %v162 = vpop.f32.mrb[0].mxu0
      %v163 = vpop.f32.mrb[0].mxu0
      %v164 = vpop.f32.mrb[0].mxu0
      %165 = vdwg.mxu0
      %v166 = vmul.f32 %v161, 0.25
      %vm167 = vcmask 36864
      %v168 = vsel %vm167, %v166, -inf
      %169 = vmax.xlane.f32.xlu0 %v168
      %v170 = vpop.xlane.xlu0 %169
      %v171 = vsub.f32 %v166, %v170
      %v172 = vmul.f32 %v171, 1.442695
      %v173 = vpow.pop %v172
      %v174 = vsel %vm167, %v173, 0.0
      %175 = vadd.xlane.f32.xlu0 %v174
      %v176 = vpop.xlane.xlu0 %175
      %v177 = vrcp.pop %v176
      %v178 = vmul.f32 %v173, %v177
      %v179 = vpack.c.bf16 %v178, %v178
      %180 = vrot.lane.b32.xlu0 %v116, 64
      %v181 = vpop.permute.xlu0 %180
      %vm182 = vcmask 39936
      %v184 = vsel %vm182, %v179, 0
      %vm186 = vcmask 1041408
      %vm187 = vcmask 1042432
      %v188 = vsel %vm186, 4294967295, 65535
      %v189 = vsel %vm187, %v188, 0
      %v191 = vand.u32 %v181, %v189
      %193 = vmatprep.subr.bf16.mxu0 0
      %194 = vmatpush1.bf16.msra.mxu0 %v191
      %195 = vmatprep.subr.bf16.mxu0 0
      %196 = vmatpush1.bf16.msra.mxu0 0
      %197 = vmatprep.subr.bf16.mxu0 0
      %198 = vmatpush1.bf16.msra.mxu0 0
      %199 = vmatprep.subr.bf16.mxu0 0
      %200 = vmatpush1.bf16.msra.mxu0 0
      %201 = vmatprep.subr.bf16.mxu0 0
      %202 = vmatpush1.bf16.msra.mxu0 0
      %203 = vmatprep.subr.bf16.mxu0 0
      %204 = vmatpush1.bf16.msra.mxu0 0
      %205 = vmatprep.subr.bf16.mxu0 0
      %206 = vmatpush1.bf16.msra.mxu0 0
      %207 = vmatprep.subr.bf16.mxu0 0
      %208 = vmatpush1.bf16.msra.mxu0 0
      %209 = vmatprep.subr.bf16.mxu0 0
      %210 = vmatpush1.bf16.msra.mxu0 0
      %211 = vmatprep.subr.bf16.mxu0 0
      %212 = vmatpush1.bf16.msra.mxu0 0
      %213 = vmatprep.subr.bf16.mxu0 0
      %214 = vmatpush1.bf16.msra.mxu0 0
      %215 = vmatprep.subr.bf16.mxu0 0
      %216 = vmatpush1.bf16.msra.mxu0 0
      %217 = vmatprep.subr.bf16.mxu0 0
      %218 = vmatpush1.bf16.msra.mxu0 0
      %219 = vmatprep.subr.bf16.mxu0 0
      %220 = vmatpush1.bf16.msra.mxu0 0
      %221 = vmatprep.subr.bf16.mxu0 0
      %222 = vmatpush1.bf16.msra.mxu0 0
      %223 = vmatprep.subr.bf16.mxu0 0
      %224 = vmatpush1.bf16.msra.mxu0 0
      %225 = vmatprep.mubr.bf16.mxu0 0
      %226 = vmatmul.mubr.bf16.gmra.mrb[0].mxu0 %v184
      %v227 = vpop.f32.mrb[0].mxu0
      %v228 = vadd.f32 0.0, %v227
      %v229 = vpop.f32.mrb[0].mxu0
      %v230 = vpop.f32.mrb[0].mxu0
      %v231 = vpop.f32.mrb[0].mxu0
      %232 = vdwg.mxu0
      %233 = vrot.lane.b32.xlu0 %v116, 112
      %v234 = vpop.permute.xlu0 %233
      %235 = vrot.lane.b32.xlu0 %v116, 80
      %v236 = vpop.permute.xlu0 %235
      %v238 = vsel %vm119, %v234, 0
      %v241 = vsel %vm119, %v236, 0
      %243 = vmatprep.subr.bf16.mxu0 0
      %244 = vmatpush1.bf16.xpose.msra.mxu0 %v241
      %245 = vmatprep.subr.bf16.mxu0 0
      %246 = vmatpush1.bf16.xpose.msra.mxu0 0
      %247 = vmatprep.subr.bf16.mxu0 0
      %248 = vmatpush1.bf16.xpose.msra.mxu0 0
      %249 = vmatprep.subr.bf16.mxu0 0
      %250 = vmatpush1.bf16.xpose.msra.mxu0 0
      %251 = vmatprep.subr.bf16.mxu0 0
      %252 = vmatpush1.bf16.xpose.msra.mxu0 0
      %253 = vmatprep.subr.bf16.mxu0 0
      %254 = vmatpush1.bf16.xpose.msra.mxu0 0
      %255 = vmatprep.subr.bf16.mxu0 0
      %256 = vmatpush1.bf16.xpose.msra.mxu0 0
      %257 = vmatprep.subr.bf16.mxu0 0
      %258 = vmatpush1.bf16.xpose.msra.mxu0 0
      %259 = vmatprep.subr.bf16.mxu0 0
      %260 = vmatpush1.bf16.xpose.msra.mxu0 0
      %261 = vmatprep.subr.bf16.mxu0 0
      %262 = vmatpush1.bf16.xpose.msra.mxu0 0
      %263 = vmatprep.subr.bf16.mxu0 0
      %264 = vmatpush1.bf16.xpose.msra.mxu0 0
      %265 = vmatprep.subr.bf16.mxu0 0
      %266 = vmatpush1.bf16.xpose.msra.mxu0 0
      %267 = vmatprep.subr.bf16.mxu0 0
      %268 = vmatpush1.bf16.xpose.msra.mxu0 0
      %269 = vmatprep.subr.bf16.mxu0 0
      %270 = vmatpush1.bf16.xpose.msra.mxu0 0
      %271 = vmatprep.subr.bf16.mxu0 0
      %272 = vmatpush1.bf16.xpose.msra.mxu0 0
      %273 = vmatprep.subr.bf16.mxu0 0
      %274 = vmatpush1.bf16.xpose.msra.mxu0 0
      %275 = vmatprep.mubr.bf16.mxu0 0
      %276 = vmatmul.mubr.bf16.gmra.mrb[0].mxu0 %v238
      %v277 = vpop.f32.mrb[0].mxu0
      %v278 = vadd.f32 0.0, %v277
      %v279 = vpop.f32.mrb[0].mxu0
      %v280 = vpop.f32.mrb[0].mxu0
      %v281 = vpop.f32.mrb[0].mxu0
      %282 = vdwg.mxu0
      %v283 = vmul.f32 %v278, 0.25
      %v284 = vsel %vm167, %v283, -inf
      %285 = vmax.xlane.f32.xlu0 %v284
      %v286 = vpop.xlane.xlu0 %285
      %v287 = vsub.f32 %v283, %v286
      %v288 = vmul.f32 %v287, 1.442695
      %v289 = vpow.pop %v288
      %v290 = vsel %vm167, %v289, 0.0
      %291 = vadd.xlane.f32.xlu0 %v290
      %v292 = vpop.xlane.xlu0 %291
      %v293 = vrcp.pop %v292
      %v294 = vmul.f32 %v289, %v293
      %v295 = vpack.c.bf16 %v294, %v294
      %296 = vrot.lane.b32.xlu0 %v116, 48
      %v297 = vpop.permute.xlu0 %296
      %v299 = vsel %vm182, %v295, 0
      %v302 = vand.u32 %v297, %v189
      %304 = vmatprep.subr.bf16.mxu0 0
      %305 = vmatpush1.bf16.msra.mxu0 %v302
      %306 = vmatprep.subr.bf16.mxu0 0
      %307 = vmatpush1.bf16.msra.mxu0 0
      %308 = vmatprep.subr.bf16.mxu0 0
      %309 = vmatpush1.bf16.msra.mxu0 0
      %310 = vmatprep.subr.bf16.mxu0 0
      %311 = vmatpush1.bf16.msra.mxu0 0
      %312 = vmatprep.subr.bf16.mxu0 0
      %313 = vmatpush1.bf16.msra.mxu0 0
      %314 = vmatprep.subr.bf16.mxu0 0
      %315 = vmatpush1.bf16.msra.mxu0 0
      %316 = vmatprep.subr.bf16.mxu0 0
      %317 = vmatpush1.bf16.msra.mxu0 0
      %318 = vmatprep.subr.bf16.mxu0 0
      %319 = vmatpush1.bf16.msra.mxu0 0
      %320 = vmatprep.subr.bf16.mxu0 0
      %321 = vmatpush1.bf16.msra.mxu0 0
      %322 = vmatprep.subr.bf16.mxu0 0
      %323 = vmatpush1.bf16.msra.mxu0 0
      %324 = vmatprep.subr.bf16.mxu0 0
      %325 = vmatpush1.bf16.msra.mxu0 0
      %326 = vmatprep.subr.bf16.mxu0 0
      %327 = vmatpush1.bf16.msra.mxu0 0
      %328 = vmatprep.subr.bf16.mxu0 0
      %329 = vmatpush1.bf16.msra.mxu0 0
      %330 = vmatprep.subr.bf16.mxu0 0
      %331 = vmatpush1.bf16.msra.mxu0 0
      %332 = vmatprep.subr.bf16.mxu0 0
      %333 = vmatpush1.bf16.msra.mxu0 0
      %334 = vmatprep.subr.bf16.mxu0 0
      %335 = vmatpush1.bf16.msra.mxu0 0
      %336 = vmatprep.mubr.bf16.mxu0 0
      %337 = vmatmul.mubr.bf16.gmra.mrb[0].mxu0 %v299
      %v338 = vpop.f32.mrb[0].mxu0
      %v339 = vadd.f32 0.0, %v338
      %v340 = vpop.f32.mrb[0].mxu0
      %v341 = vpop.f32.mrb[0].mxu0
      %v342 = vpop.f32.mrb[0].mxu0
      %343 = vdwg.mxu0
      %345 = vrot.lane.b32.xlu0 %v339, 16
      %v346 = vpop.permute.xlu0 %345
      %v348 = vsel %vm119, %v228, %v346
      %v349 = vpack.c.bf16 %v348, %v348
      %vm350 = vcmask 256000
      %vm351 = vsmask.f32 2304
      %vm352 = vmand %vm350, %vm351
      %v353 = vld [vmem:[%s111] sm:$0x7]
      %v354 = vsel %vm352, %v349, %v353
      %355 = vst [vmem:[%s111] sm:$0x7] %v354
      %p356 = scmp.lt.s32.totalorder %s12, 1
      %s357 = scalar_select %p356, %s12, 1
      %s358 = smul.addr %s357, 4
      %s359 = scalar_lea.vmem %s1, %s358
      // Predicated region
      $region25: #{frozen_dinov2_encoder_forward.12} parent=23 // pred_check
        %p360 = pneg %p56
      $region26: #{frozen_dinov2_encoder_forward.12} parent=23 // pred_check_branch
        %362 = sbr.rel (%p360) target = $region28
      $region27: #{frozen_dinov2_encoder_forward.12} parent=23 // pred_region
        _
      $region28: #{frozen_dinov2_encoder_forward.12} parent=23 // pred_fallthru
        _
    $region24: #{frozen_dinov2_encoder_forward.12} parent=5 // pred_fallthru
      _
    %p363 = scmp.le.s32.totalorder 2, %s7
    // Predicated region
    $region29: #{frozen_dinov2_encoder_forward.12} parent=5 // pred_check
      %p364 = pneg %p363
    $region30: #{frozen_dinov2_encoder_forward.12} parent=5 // pred_check_branch
      %366 = sbr.rel (%p364) target = $region32
    $region31: #{frozen_dinov2_encoder_forward.12} parent=5 // pred_region
      %s367 = ssub.s32 %s7, 2
      // Predicated region
      $region33: #{frozen_dinov2_encoder_forward.12} parent=31 // pred_check
        %p368 = pneg %p62
      $region34: #{frozen_dinov2_encoder_forward.12} parent=31 // pred_check_branch
        %370 = sbr.rel (%p368) target = $region36
      $region35: #{frozen_dinov2_encoder_forward.12} parent=31 // pred_region
        %p371 = scmp.lt.s32.totalorder %s13, 1
        %s372 = scalar_select %p371, %s13, 1
        %s373 = smul.addr %s372, 4
        %s374 = scalar_lea.vmem %s1, %s373
      $region36: #{frozen_dinov2_encoder_forward.12} parent=31 // pred_fallthru
        _
    $region32: #{frozen_dinov2_encoder_forward.12} parent=5 // pred_fallthru
      _
  $region6: #{frozen_dinov2_encoder_forward.12} parent=0 // loop_footer
    %s11 = sadd.s32 1, %s7
  $region7: #{frozen_dinov2_encoder_forward.12} parent=0 // loop_footer_branch
    %6 = sbr.rel target = $region3
  $region8: #{frozen_dinov2_encoder_forward.12} parent=0 // loop_exit
    _

// kernel: frozen_dinov2_encoder_forward.11
$region0: #{frozen_dinov2_encoder_forward.11}
  #allocation0 [shape = 'u32[]', space=smem, size = 0x4, offset = 0x4, fixed_abs, tag = 'smem constant byte address 0x4 - core index']
  #allocation1 [shape = 'u32[144,128]{1,0:T(1,128)}', space=vmem, size = 0x12000, scoped, tag = 'internal scratch']
  %s0 = inlined_call_operand.vmem [shape: bf16[10,32], index: 0, kind: input, shape index: {}]
  %s1 = inlined_call_operand.vmem [shape: f32[1,32], index: 1, kind: input, shape index: {}]
  %s2 = inlined_call_operand.vmem [shape: f32[1,32], index: 2, kind: input, shape index: {}]
  %s3 = inlined_call_operand.vmem [shape: bf16[32,96], index: 3, kind: input, shape index: {}]
  %s4 = inlined_call_operand.vmem [shape: f32[1,96], index: 4, kind: input, shape index: {}]
  %s5 = inlined_call_operand.vmem [shape: bf16[10,96], index: 5, kind: output, shape index: {}]
  %s6 = sld [smem:[#allocation0]]
  $region30: #{frozen_dinov2_encoder_forward.11} parent=0
    _
  %s8 = ssub.s32 1, %s6
  %s9 = scalar_select 0, %s8, %s6
  // Predicated region
  $region2: #{frozen_dinov2_encoder_forward.11} parent=0 // pred_check
    _
  $region3: #{frozen_dinov2_encoder_forward.11} parent=0 // pred_check_branch
    %11 = sbr.rel (0) target = $region5
  $region4: #{frozen_dinov2_encoder_forward.11} parent=0 // pred_region
    _
  $region5: #{frozen_dinov2_encoder_forward.11} parent=0 // pred_fallthru
    _
  // Predicated region
  $region6: #{frozen_dinov2_encoder_forward.11} parent=0 // pred_check
    _
  $region7: #{frozen_dinov2_encoder_forward.11} parent=0 // pred_check_branch
    %13 = sbr.rel (0) target = $region9
  $region8: #{frozen_dinov2_encoder_forward.11} parent=0 // pred_region
    _
  $region9: #{frozen_dinov2_encoder_forward.11} parent=0 // pred_fallthru
    _
  // Predicated region
  $region10: #{frozen_dinov2_encoder_forward.11} parent=0 // pred_check
    _
  $region11: #{frozen_dinov2_encoder_forward.11} parent=0 // pred_check_branch
    %15 = sbr.rel (0) target = $region13
  $region12: #{frozen_dinov2_encoder_forward.11} parent=0 // pred_region
    _
  $region13: #{frozen_dinov2_encoder_forward.11} parent=0 // pred_fallthru
    _
  // Predicated region
  $region14: #{frozen_dinov2_encoder_forward.11} parent=0 // pred_check
    _
  $region15: #{frozen_dinov2_encoder_forward.11} parent=0 // pred_check_branch
    %17 = sbr.rel (0) target = $region17
  $region16: #{frozen_dinov2_encoder_forward.11} parent=0 // pred_region
    _
  $region17: #{frozen_dinov2_encoder_forward.11} parent=0 // pred_fallthru
    _
  // Predicated region
  $region18: #{frozen_dinov2_encoder_forward.11} parent=0 // pred_check
    _
  $region19: #{frozen_dinov2_encoder_forward.11} parent=0 // pred_check_branch
    %19 = sbr.rel (0) target = $region21
  $region20: #{frozen_dinov2_encoder_forward.11} parent=0 // pred_region
    _
  $region21: #{frozen_dinov2_encoder_forward.11} parent=0 // pred_fallthru
    _
  %v21 = vld [vmem:[%s0] sm:$0xf]
  %v22 = vld [vmem:[%s0 + $0x4] sm:$0x1]
  %v23 = vunpack.c.l.bf16 %v21
  %v24 = vunpack.c.l.bf16 %v22
  %vm25 = vcmask 261120
  %v26 = vsel %vm25, %v23, 0.0
  %27 = vadd.xlane.f32.xlu0 %v26
  %v28 = vpop.xlane.xlu0 %27
  %vm29 = vcmask 254976
  %v30 = vsel %vm29, %v24, 0.0
  %31 = vadd.xlane.f32.xlu0 %v30
  %v32 = vpop.xlane.xlu0 %31
  %v33 = vrcp.pop 32.0
  %v34 = vmul.f32 %v28, %v33
  %v35 = vmul.f32 %v32, %v33
  %v36 = vsub.f32 %v23, %v34
  %v37 = vsub.f32 %v24, %v35
  %v38 = vmul.f32 %v36, %v36
  %v39 = vmul.f32 %v37, %v37
  %v40 = vsel %vm25, %v38, 0.0
  %41 = vadd.xlane.f32.xlu0 %v40
  %v42 = vpop.xlane.xlu0 %41
  %v43 = vsel %vm29, %v39, 0.0
  %44 = vadd.xlane.f32.xlu0 %v43
  %v45 = vpop.xlane.xlu0 %44
  %v46 = vmul.f32 %v42, %v33
  %v47 = vmul.f32 %v45, %v33
  %v48 = vadd.f32 %v46, 1e-06
  %v49 = vadd.f32 %v47, 1e-06
  %v50 = vrsqrt.pop %v48
  %v51 = vrsqrt.pop %v49
  %v52 = vmul.f32 %v36, %v50
  %v53 = vmul.f32 %v37, %v51
  %v54 = vld [vmem:[%s1] sm:$0x1]
  %v56 = vlaneseq
  %v57 = vshrl.u32 %v56, 7
  %v58 = vsub.s32 0, %v57
  %v59 = vrot.slane %v54, %v58
  %v61 = vmul.f32 %v52, %v59
  %v62 = vmul.f32 %v53, %v59
  %v63 = vld [vmem:[%s2] sm:$0x1]
  %v65 = vlaneseq
  %v66 = vshrl.u32 %v65, 7
  %v67 = vsub.s32 0, %v66
  %v68 = vrot.slane %v63, %v67
  %v70 = vadd.f32 %v61, %v68
  %v71 = vadd.f32 %v62, %v68
  %v72 = vpack.c.bf16 %v71, %v70
  %v73 = vld [vmem:[%s3] sm:$0xf]
  %v74 = vld [vmem:[%s3 + $0x4] sm:$0xf]
  %v75 = vld [vmem:[%s3 + $0x8] sm:$0xf]
  %v76 = vld [vmem:[%s3 + $0xc] sm:$0xf]
  %v77 = vld [vmem:[%s4] sm:$0x1]
  %v79 = vlaneseq
  %v80 = vshrl.u32 %v79, 7
  %v81 = vsub.s32 0, %v80
  %v82 = vrot.slane %v77, %v81
  %v88 = vunpack.c.l.b16 %v73
  %v89 = vunpack.c.l.b16 %v74
  %v90 = vunpack.c.l.b16 %v75
  %v91 = vunpack.c.l.b16 %v76
  %v92 = vpack.c.b16 %v89, %v88
  %v93 = vpack.c.b16 %v91, %v90
  %v97 = vsel %vm25, %v72, 0
  %99 = vmatprep.subr.bf16.mxu0 0
  %100 = vmatpush1.bf16.msra.mxu0 %v92
  %101 = vmatprep.subr.bf16.mxu0 0
  %102 = vmatpush1.bf16.msra.mxu0 %v93
  %103 = vmatprep.subr.bf16.mxu0 0
  %104 = vmatpush1.bf16.msra.mxu0 0
  %105 = vmatprep.subr.bf16.mxu0 0
  %106 = vmatpush1.bf16.msra.mxu0 0
  %107 = vmatprep.subr.bf16.mxu0 0
  %108 = vmatpush1.bf16.msra.mxu0 0
  %109 = vmatprep.subr.bf16.mxu0 0
  %110 = vmatpush1.bf16.msra.mxu0 0
  %111 = vmatprep.subr.bf16.mxu0 0
  %112 = vmatpush1.bf16.msra.mxu0 0
  %113 = vmatprep.subr.bf16.mxu0 0
  %114 = vmatpush1.bf16.msra.mxu0 0
  %115 = vmatprep.subr.bf16.mxu0 0
  %116 = vmatpush1.bf16.msra.mxu0 0
  %117 = vmatprep.subr.bf16.mxu0 0
  %118 = vmatpush1.bf16.msra.mxu0 0
  %119 = vmatprep.subr.bf16.mxu0 0
  %120 = vmatpush1.bf16.msra.mxu0 0
  %121 = vmatprep.subr.bf16.mxu0 0
  %122 = vmatpush1.bf16.msra.mxu0 0
  %123 = vmatprep.subr.bf16.mxu0 0
  %124 = vmatpush1.bf16.msra.mxu0 0
  %125 = vmatprep.subr.bf16.mxu0 0
  %126 = vmatpush1.bf16.msra.mxu0 0
  %127 = vmatprep.subr.bf16.mxu0 0
  %128 = vmatpush1.bf16.msra.mxu0 0
  %129 = vmatprep.subr.bf16.mxu0 0
  %130 = vmatpush1.bf16.msra.mxu0 0
  %131 = vmatprep.mubr.bf16.mxu0 0
  %132 = vmatmul.mubr.bf16.gmra.mrb[0].mxu0 %v97
  %v133 = vpop.f32.mrb[0].mxu0
  %v134 = vadd.f32 %v82, %v133
  %v135 = vpop.f32.mrb[0].mxu0
  %v136 = vpop.f32.mrb[0].mxu0
  %v137 = vadd.f32 %v82, %v136
  %v138 = vpop.f32.mrb[0].mxu0
  %139 = vdwg.mxu0
  %v140 = vpack.c.bf16 %v137, %v134
  %v142 = vunpack.c.l.b16 %v140
  %v143 = vunpack.c.h.b16 %v140
  %v144 = vpack.c.b16 %v142, %v142
  %v145 = vpack.c.b16 %v143, %v143
  %vm148 = vcmask 781312
  %149 = vst.msk [vmem:[%s5] sm:$0xf] %vm148, %v144
  %vm150 = vcmask 778240
  %151 = vst.msk [vmem:[%s5 + $0x4] sm:$0x1] %vm150, %v145
  // Predicated region
  $region22: #{frozen_dinov2_encoder_forward.11} parent=0 // pred_check
    _
  $region23: #{frozen_dinov2_encoder_forward.11} parent=0 // pred_check_branch
    %153 = sbr.rel (0) target = $region25
  $region24: #{frozen_dinov2_encoder_forward.11} parent=0 // pred_region
    _
  $region25: #{frozen_dinov2_encoder_forward.11} parent=0 // pred_fallthru
    _
  // Predicated region
  $region26: #{frozen_dinov2_encoder_forward.11} parent=0 // pred_check
    _
  $region27: #{frozen_dinov2_encoder_forward.11} parent=0 // pred_check_branch
    %155 = sbr.rel (0) target = $region29
  $region28: #{frozen_dinov2_encoder_forward.11} parent=0 // pred_region
    _
  $region29: #{frozen_dinov2_encoder_forward.11} parent=0 // pred_fallthru
    _

// kernel: frozen_dinov2_encoder_forward.19
$region0: #{frozen_dinov2_encoder_forward.19}
  #allocation0 [shape = 'u32[]', space=smem, size = 0x4, offset = 0x4, fixed_abs, tag = 'smem constant byte address 0x4 - core index']
  #allocation1 [shape = 'u32[144,128]{1,0:T(1,128)}', space=vmem, size = 0x12000, scoped, tag = 'internal scratch']
  %s0 = inlined_call_operand.vmem [shape: bf16[10,32], index: 0, kind: input, shape index: {}]
  %s1 = inlined_call_operand.vmem [shape: f32[1,32], index: 1, kind: input, shape index: {}]
  %s2 = inlined_call_operand.vmem [shape: f32[1,32], index: 2, kind: input, shape index: {}]
  %s3 = inlined_call_operand.vmem [shape: bf16[32,24], index: 3, kind: input, shape index: {}]
  %s4 = inlined_call_operand.vmem [shape: f32[1,24], index: 4, kind: input, shape index: {}]
  %s5 = inlined_call_operand.vmem [shape: f32[10,24], index: 5, kind: output, shape index: {}]
  %s6 = sld [smem:[#allocation0]]
  $region30: #{frozen_dinov2_encoder_forward.19} parent=0
    _
  %s8 = ssub.s32 1, %s6
  %s9 = scalar_select 0, %s8, %s6
  // Predicated region
  $region2: #{frozen_dinov2_encoder_forward.19} parent=0 // pred_check
    _
  $region3: #{frozen_dinov2_encoder_forward.19} parent=0 // pred_check_branch
    %11 = sbr.rel (0) target = $region5
  $region4: #{frozen_dinov2_encoder_forward.19} parent=0 // pred_region
    _
  $region5: #{frozen_dinov2_encoder_forward.19} parent=0 // pred_fallthru
    _
  // Predicated region
  $region6: #{frozen_dinov2_encoder_forward.19} parent=0 // pred_check
    _
  $region7: #{frozen_dinov2_encoder_forward.19} parent=0 // pred_check_branch
    %13 = sbr.rel (0) target = $region9
  $region8: #{frozen_dinov2_encoder_forward.19} parent=0 // pred_region
    _
  $region9: #{frozen_dinov2_encoder_forward.19} parent=0 // pred_fallthru
    _
  // Predicated region
  $region10: #{frozen_dinov2_encoder_forward.19} parent=0 // pred_check
    _
  $region11: #{frozen_dinov2_encoder_forward.19} parent=0 // pred_check_branch
    %15 = sbr.rel (0) target = $region13
  $region12: #{frozen_dinov2_encoder_forward.19} parent=0 // pred_region
    _
  $region13: #{frozen_dinov2_encoder_forward.19} parent=0 // pred_fallthru
    _
  // Predicated region
  $region14: #{frozen_dinov2_encoder_forward.19} parent=0 // pred_check
    _
  $region15: #{frozen_dinov2_encoder_forward.19} parent=0 // pred_check_branch
    %17 = sbr.rel (0) target = $region17
  $region16: #{frozen_dinov2_encoder_forward.19} parent=0 // pred_region
    _
  $region17: #{frozen_dinov2_encoder_forward.19} parent=0 // pred_fallthru
    _
  // Predicated region
  $region18: #{frozen_dinov2_encoder_forward.19} parent=0 // pred_check
    _
  $region19: #{frozen_dinov2_encoder_forward.19} parent=0 // pred_check_branch
    %19 = sbr.rel (0) target = $region21
  $region20: #{frozen_dinov2_encoder_forward.19} parent=0 // pred_region
    _
  $region21: #{frozen_dinov2_encoder_forward.19} parent=0 // pred_fallthru
    _
  %v21 = vld [vmem:[%s0] sm:$0xf]
  %v22 = vld [vmem:[%s0 + $0x4] sm:$0x1]
  %v23 = vunpack.c.l.bf16 %v21
  %v24 = vunpack.c.l.bf16 %v22
  %vm25 = vcmask 261120
  %v26 = vsel %vm25, %v23, 0.0
  %27 = vadd.xlane.f32.xlu0 %v26
  %v28 = vpop.xlane.xlu0 %27
  %vm29 = vcmask 254976
  %v30 = vsel %vm29, %v24, 0.0
  %31 = vadd.xlane.f32.xlu0 %v30
  %v32 = vpop.xlane.xlu0 %31
  %v33 = vrcp.pop 32.0
  %v34 = vmul.f32 %v28, %v33
  %v35 = vmul.f32 %v32, %v33
  %v36 = vsub.f32 %v23, %v34
  %v37 = vsub.f32 %v24, %v35
  %v38 = vmul.f32 %v36, %v36
  %v39 = vmul.f32 %v37, %v37
  %v40 = vsel %vm25, %v38, 0.0
  %41 = vadd.xlane.f32.xlu0 %v40
  %v42 = vpop.xlane.xlu0 %41
  %v43 = vsel %vm29, %v39, 0.0
  %44 = vadd.xlane.f32.xlu0 %v43
  %v45 = vpop.xlane.xlu0 %44
  %v46 = vmul.f32 %v42, %v33
  %v47 = vmul.f32 %v45, %v33
  %v48 = vadd.f32 %v46, 1e-06
  %v49 = vadd.f32 %v47, 1e-06
  %v50 = vrsqrt.pop %v48
  %v51 = vrsqrt.pop %v49
  %v52 = vmul.f32 %v36, %v50
  %v53 = vmul.f32 %v37, %v51
  %v54 = vld [vmem:[%s1] sm:$0x1]
  %v56 = vlaneseq
  %v57 = vshrl.u32 %v56, 7
  %v58 = vsub.s32 0, %v57
  %v59 = vrot.slane %v54, %v58
  %v61 = vmul.f32 %v52, %v59
  %v62 = vmul.f32 %v53, %v59
  %v63 = vld [vmem:[%s2] sm:$0x1]
  %v65 = vlaneseq
  %v66 = vshrl.u32 %v65, 7
  %v67 = vsub.s32 0, %v66
  %v68 = vrot.slane %v63, %v67
  %v70 = vadd.f32 %v61, %v68
  %v71 = vadd.f32 %v62, %v68
  %v72 = vpack.c.bf16 %v71, %v70
  %v73 = vld [vmem:[%s3] sm:$0xf]
  %v74 = vld [vmem:[%s3 + $0x4] sm:$0xf]
  %v75 = vld [vmem:[%s3 + $0x8] sm:$0xf]
  %v76 = vld [vmem:[%s3 + $0xc] sm:$0xf]
  %v77 = vld [vmem:[%s4] sm:$0x1]
  %v79 = vlaneseq
  %v80 = vshrl.u32 %v79, 7
  %v81 = vsub.s32 0, %v80
  %v82 = vrot.slane %v77, %v81
  %v88 = vunpack.c.l.b16 %v73
  %v89 = vunpack.c.l.b16 %v74
  %v90 = vunpack.c.l.b16 %v75
  %v91 = vunpack.c.l.b16 %v76
  %v92 = vpack.c.b16 %v89, %v88
  %v93 = vpack.c.b16 %v91, %v90
  %v97 = vsel %vm25, %v72, 0
  %99 = vmatprep.subr.bf16.mxu0 0
  %100 = vmatpush1.bf16.msra.mxu0 %v92
  %101 = vmatprep.subr.bf16.mxu0 0
  %102 = vmatpush1.bf16.msra.mxu0 %v93
  %103 = vmatprep.subr.bf16.mxu0 0
  %104 = vmatpush1.bf16.msra.mxu0 0
  %105 = vmatprep.subr.bf16.mxu0 0
  %106 = vmatpush1.bf16.msra.mxu0 0
  %107 = vmatprep.subr.bf16.mxu0 0
  %108 = vmatpush1.bf16.msra.mxu0 0
  %109 = vmatprep.subr.bf16.mxu0 0
  %110 = vmatpush1.bf16.msra.mxu0 0
  %111 = vmatprep.subr.bf16.mxu0 0
  %112 = vmatpush1.bf16.msra.mxu0 0
  %113 = vmatprep.subr.bf16.mxu0 0
  %114 = vmatpush1.bf16.msra.mxu0 0
  %115 = vmatprep.subr.bf16.mxu0 0
  %116 = vmatpush1.bf16.msra.mxu0 0
  %117 = vmatprep.subr.bf16.mxu0 0
  %118 = vmatpush1.bf16.msra.mxu0 0
  %119 = vmatprep.subr.bf16.mxu0 0
  %120 = vmatpush1.bf16.msra.mxu0 0
  %121 = vmatprep.subr.bf16.mxu0 0
  %122 = vmatpush1.bf16.msra.mxu0 0
  %123 = vmatprep.subr.bf16.mxu0 0
  %124 = vmatpush1.bf16.msra.mxu0 0
  %125 = vmatprep.subr.bf16.mxu0 0
  %126 = vmatpush1.bf16.msra.mxu0 0
  %127 = vmatprep.subr.bf16.mxu0 0
  %128 = vmatpush1.bf16.msra.mxu0 0
  %129 = vmatprep.subr.bf16.mxu0 0
  %130 = vmatpush1.bf16.msra.mxu0 0
  %131 = vmatprep.mubr.bf16.mxu0 0
  %132 = vmatmul.mubr.bf16.gmra.mrb[0].mxu0 %v97
  %v133 = vpop.f32.mrb[0].mxu0
  %v134 = vadd.f32 %v82, %v133
  %v135 = vpop.f32.mrb[0].mxu0
  %v136 = vpop.f32.mrb[0].mxu0
  %v137 = vadd.f32 %v82, %v136
  %v138 = vpop.f32.mrb[0].mxu0
  %139 = vdwg.mxu0
  %vm140 = vcmask 195584
  %141 = vst.msk [vmem:[%s5] sm:$0xff] %vm140, %v134
  %vm142 = vcmask 189440
  %143 = vst.msk [vmem:[%s5 + $0x8] sm:$0x3] %vm142, %v137
  // Predicated region
  $region22: #{frozen_dinov2_encoder_forward.19} parent=0 // pred_check
    _
  $region23: #{frozen_dinov2_encoder_forward.19} parent=0 // pred_check_branch
    %145 = sbr.rel (0) target = $region25
  $region24: #{frozen_dinov2_encoder_forward.19} parent=0 // pred_region
    _
  $region25: #{frozen_dinov2_encoder_forward.19} parent=0 // pred_fallthru
    _
  // Predicated region
  $region26: #{frozen_dinov2_encoder_forward.19} parent=0 // pred_check
    _
  $region27: #{frozen_dinov2_encoder_forward.19} parent=0 // pred_check_branch
    %147 = sbr.rel (0) target = $region29
  $region28: #{frozen_dinov2_encoder_forward.19} parent=0 // pred_region
    _
  $region29: #{frozen_dinov2_encoder_forward.19} parent=0 // pred_fallthru
    _

// kernel: frozen_dinov2_encoder_forward.14
$region0: #{frozen_dinov2_encoder_forward.14}
  #allocation0 [shape = 'u32[]', space=smem, size = 0x4, offset = 0x4, fixed_abs, tag = 'smem constant byte address 0x4 - core index']
  #allocation1 [shape = 'u32[144,128]{1,0:T(1,128)}', space=vmem, size = 0x12000, scoped, tag = 'internal scratch']
  #allocation2 [shape = 'bf16[10,32]{1,0:T(8,128)(2,1)}', space=vmem, size = 0x1000, scoped, tag = 'scratch operand']
  #allocation3 [shape = 'f32[10,32]{1,0:T(8,128)}', space=vmem, size = 0x2000, scoped, tag = 'scratch operand']
  %s0 = inlined_call_operand.vmem [shape: bf16[10,32], index: 0, kind: input, shape index: {}, may-alias: {0,10}]
  %s1 = inlined_call_operand.vmem [shape: f32[1,32], index: 1, kind: input, shape index: {}]
  %s2 = inlined_call_operand.vmem [shape: f32[1,32], index: 2, kind: input, shape index: {}]
  %s3 = inlined_call_operand.vmem [shape: bf16[32,64], index: 3, kind: input, shape index: {}]
  %s4 = inlined_call_operand.vmem [shape: f32[1,64], index: 4, kind: input, shape index: {}]
  %s5 = inlined_call_operand.vmem [shape: bf16[32,64], index: 5, kind: input, shape index: {}]
  %s6 = inlined_call_operand.vmem [shape: f32[1,64], index: 6, kind: input, shape index: {}]
  %s7 = inlined_call_operand.vmem [shape: bf16[64,32], index: 7, kind: input, shape index: {}]
  %s8 = inlined_call_operand.vmem [shape: f32[1,32], index: 8, kind: input, shape index: {}]
  %s9 = inlined_call_operand.vmem [shape: f32[1,32], index: 9, kind: input, shape index: {}]
  %s10 = inlined_call_operand.vmem [shape: bf16[10,32], index: 10, kind: input, shape index: {}, may-alias: {0,10}]
  %s11 = inlined_call_operand.vmem [shape: bf16[10,32], index: 11, kind: output, shape index: {}]
  %s12 = sld [smem:[#allocation0]]
  $region62: #{frozen_dinov2_encoder_forward.14} parent=0
    _
  %s14 = ssub.s32 1, %s12
  %s15 = scalar_select 0, %s14, %s12
  // Predicated region
  $region2: #{frozen_dinov2_encoder_forward.14} parent=0 // pred_check
    _
  $region3: #{frozen_dinov2_encoder_forward.14} parent=0 // pred_check_branch
    %17 = sbr.rel (0) target = $region5
  $region4: #{frozen_dinov2_encoder_forward.14} parent=0 // pred_region
    _
  $region5: #{frozen_dinov2_encoder_forward.14} parent=0 // pred_fallthru
    _
  // Predicated region
  $region6: #{frozen_dinov2_encoder_forward.14} parent=0 // pred_check
    _
  $region7: #{frozen_dinov2_encoder_forward.14} parent=0 // pred_check_branch
    %19 = sbr.rel (0) target = $region9
  $region8: #{frozen_dinov2_encoder_forward.14} parent=0 // pred_region
    _
  $region9: #{frozen_dinov2_encoder_forward.14} parent=0 // pred_fallthru
    _
  // Predicated region
  $region10: #{frozen_dinov2_encoder_forward.14} parent=0 // pred_check
    _
  $region11: #{frozen_dinov2_encoder_forward.14} parent=0 // pred_check_branch
    %21 = sbr.rel (0) target = $region13
  $region12: #{frozen_dinov2_encoder_forward.14} parent=0 // pred_region
    _
  $region13: #{frozen_dinov2_encoder_forward.14} parent=0 // pred_fallthru
    _
  // Predicated region
  $region14: #{frozen_dinov2_encoder_forward.14} parent=0 // pred_check
    _
  $region15: #{frozen_dinov2_encoder_forward.14} parent=0 // pred_check_branch
    %23 = sbr.rel (0) target = $region17
  $region16: #{frozen_dinov2_encoder_forward.14} parent=0 // pred_region
    _
  $region17: #{frozen_dinov2_encoder_forward.14} parent=0 // pred_fallthru
    _
  // Predicated region
  $region18: #{frozen_dinov2_encoder_forward.14} parent=0 // pred_check
    _
  $region19: #{frozen_dinov2_encoder_forward.14} parent=0 // pred_check_branch
    %25 = sbr.rel (0) target = $region21
  $region20: #{frozen_dinov2_encoder_forward.14} parent=0 // pred_region
    _
  $region21: #{frozen_dinov2_encoder_forward.14} parent=0 // pred_fallthru
    _
  // Predicated region
  $region22: #{frozen_dinov2_encoder_forward.14} parent=0 // pred_check
    _
  $region23: #{frozen_dinov2_encoder_forward.14} parent=0 // pred_check_branch
    %27 = sbr.rel (0) target = $region25
  $region24: #{frozen_dinov2_encoder_forward.14} parent=0 // pred_region
    _
  $region25: #{frozen_dinov2_encoder_forward.14} parent=0 // pred_fallthru
    _
  // Predicated region
  $region26: #{frozen_dinov2_encoder_forward.14} parent=0 // pred_check
    _
  $region27: #{frozen_dinov2_encoder_forward.14} parent=0 // pred_check_branch
    %29 = sbr.rel (0) target = $region29
  $region28: #{frozen_dinov2_encoder_forward.14} parent=0 // pred_region
    _
  $region29: #{frozen_dinov2_encoder_forward.14} parent=0 // pred_fallthru
    _
  // Predicated region
  $region30: #{frozen_dinov2_encoder_forward.14} parent=0 // pred_check
    _
  $region31: #{frozen_dinov2_encoder_forward.14} parent=0 // pred_check_branch
    %31 = sbr.rel (0) target = $region33
  $region32: #{frozen_dinov2_encoder_forward.14} parent=0 // pred_region
    _
  $region33: #{frozen_dinov2_encoder_forward.14} parent=0 // pred_fallthru
    _
  // Predicated region
  $region34: #{frozen_dinov2_encoder_forward.14} parent=0 // pred_check
    _
  $region35: #{frozen_dinov2_encoder_forward.14} parent=0 // pred_check_branch
    %33 = sbr.rel (0) target = $region37
  $region36: #{frozen_dinov2_encoder_forward.14} parent=0 // pred_region
    _
  $region37: #{frozen_dinov2_encoder_forward.14} parent=0 // pred_fallthru
    _
  // Predicated region
  $region38: #{frozen_dinov2_encoder_forward.14} parent=0 // pred_check
    _
  $region39: #{frozen_dinov2_encoder_forward.14} parent=0 // pred_check_branch
    %35 = sbr.rel (0) target = $region41
  $region40: #{frozen_dinov2_encoder_forward.14} parent=0 // pred_region
    _
  $region41: #{frozen_dinov2_encoder_forward.14} parent=0 // pred_fallthru
    _
  // Predicated region
  $region42: #{frozen_dinov2_encoder_forward.14} parent=0 // pred_check
    _
  $region43: #{frozen_dinov2_encoder_forward.14} parent=0 // pred_check_branch
    %37 = sbr.rel (0) target = $region45
  $region44: #{frozen_dinov2_encoder_forward.14} parent=0 // pred_region
    _
  $region45: #{frozen_dinov2_encoder_forward.14} parent=0 // pred_fallthru
    _
  %p39 = scmp.eq.s32.totalorder 0, 0
  // Predicated region
  $region46: #{frozen_dinov2_encoder_forward.14} parent=0 // pred_check
    %p40 = pneg %p39
  $region47: #{frozen_dinov2_encoder_forward.14} parent=0 // pred_check_branch
    %42 = sbr.rel (%p40) target = $region49
  $region48: #{frozen_dinov2_encoder_forward.14} parent=0 // pred_region
    %v43 = vld [vmem:[%s0] sm:$0xf]
    %v44 = vld [vmem:[%s0 + $0x4] sm:$0x1]
    %v45 = vunpack.c.l.bf16 %v43
    %v46 = vunpack.c.l.bf16 %v44
    %vm47 = vcmask 261120
    %v48 = vsel %vm47, %v45, 0.0
    %49 = vadd.xlane.f32.xlu0 %v48
    %v50 = vpop.xlane.xlu0 %49
    %vm51 = vcmask 254976
    %v52 = vsel %vm51, %v46, 0.0
    %53 = vadd.xlane.f32.xlu0 %v52
    %v54 = vpop.xlane.xlu0 %53
    %v55 = vrcp.pop 32.0
    %v56 = vmul.f32 %v50, %v55
    %v57 = vmul.f32 %v54, %v55
    %v58 = vsub.f32 %v45, %v56
    %v59 = vsub.f32 %v46, %v57
    %v60 = vmul.f32 %v58, %v58
    %v61 = vmul.f32 %v59, %v59
    %v62 = vsel %vm47, %v60, 0.0
    %63 = vadd.xlane.f32.xlu0 %v62
    %v64 = vpop.xlane.xlu0 %63
    %v65 = vsel %vm51, %v61, 0.0
    %66 = vadd.xlane.f32.xlu0 %v65
    %v67 = vpop.xlane.xlu0 %66
    %v68 = vmul.f32 %v64, %v55
    %v69 = vmul.f32 %v67, %v55
    %v70 = vadd.f32 %v68, 1e-06
    %v71 = vadd.f32 %v69, 1e-06
    %v72 = vrsqrt.pop %v70
    %v73 = vrsqrt.pop %v71
    %v74 = vmul.f32 %v58, %v72
    %v75 = vmul.f32 %v59, %v73
    %v76 = vld [vmem:[%s1] sm:$0x1]
    %v78 = vlaneseq
    %v79 = vshrl.u32 %v78, 7
    %v80 = vsub.s32 0, %v79
    %v81 = vrot.slane %v76, %v80
    %v83 = vmul.f32 %v74, %v81
    %v84 = vmul.f32 %v75, %v81
    %v85 = vld [vmem:[%s2] sm:$0x1]
    %v87 = vlaneseq
    %v88 = vshrl.u32 %v87, 7
    %v89 = vsub.s32 0, %v88
    %v90 = vrot.slane %v85, %v89
    %v92 = vadd.f32 %v83, %v90
    %v93 = vadd.f32 %v84, %v90
    %v94 = vpack.c.bf16 %v93, %v92
    %v96 = vunpack.c.l.b16 %v94
    %v97 = vunpack.c.h.b16 %v94
    %v98 = vpack.c.b16 %v96, %v96
    %v99 = vpack.c.b16 %v97, %v97
    %vm102 = vcmask 257024
    %103 = vst.msk [vmem:[#allocation2] sm:$0xf] %vm102, %v98
    %vm104 = vcmask 253952
    %105 = vst.msk [vmem:[#allocation2 + $0x4] sm:$0x1] %vm104, %v99
    %106 = vst.msk [vmem:[#allocation3] sm:$0xff] %vm47, 0.0
    %107 = vst.msk [vmem:[#allocation3 + $0x8] sm:$0x3] %vm51, 0.0
  $region49: #{frozen_dinov2_encoder_forward.14} parent=0 // pred_fallthru
    _
  %v108 = vld [vmem:[#allocation2] sm:$0xf]
  %v109 = vld [vmem:[#allocation2 + $0x4] sm:$0x1]
  %v110 = vld [vmem:[%s3] sm:$0xf]
  %v111 = vld [vmem:[%s3 + $0x4] sm:$0xf]
  %v112 = vld [vmem:[%s3 + $0x8] sm:$0xf]
  %v113 = vld [vmem:[%s3 + $0xc] sm:$0xf]
  %v114 = vld [vmem:[%s4] sm:$0x1]
  %v116 = vlaneseq
  %v117 = vshrl.u32 %v116, 7
  %v118 = vsub.s32 0, %v117
  %v119 = vrot.slane %v114, %v118
  %v123 = vunpack.c.l.b16 %v108
  %v124 = vunpack.c.l.b16 %v109
  %v125 = vpack.c.b16 %v124, %v123
  %v130 = vunpack.c.l.b16 %v110
  %v131 = vunpack.c.l.b16 %v111
  %v132 = vunpack.c.l.b16 %v112
  %v133 = vunpack.c.l.b16 %v113
  %v134 = vpack.c.b16 %v131, %v130
  %v135 = vpack.c.b16 %v133, %v132
  %vm138 = vcmask 261120
  %v140 = vsel %vm138, %v125, 0
  %142 = vmatprep.subr.bf16.mxu0 0
  %143 = vmatpush1.bf16.msra.mxu0 %v134
  %144 = vmatprep.subr.bf16.mxu0 0
  %145 = vmatpush1.bf16.msra.mxu0 %v135
  %146 = vmatprep.subr.bf16.mxu0 0
  %147 = vmatpush1.bf16.msra.mxu0 0
  %148 = vmatprep.subr.bf16.mxu0 0
  %149 = vmatpush1.bf16.msra.mxu0 0
  %150 = vmatprep.subr.bf16.mxu0 0
  %151 = vmatpush1.bf16.msra.mxu0 0
  %152 = vmatprep.subr.bf16.mxu0 0
  %153 = vmatpush1.bf16.msra.mxu0 0
  %154 = vmatprep.subr.bf16.mxu0 0
  %155 = vmatpush1.bf16.msra.mxu0 0
  %156 = vmatprep.subr.bf16.mxu0 0
  %157 = vmatpush1.bf16.msra.mxu0 0
  %158 = vmatprep.subr.bf16.mxu0 0
  %159 = vmatpush1.bf16.msra.mxu0 0
  %160 = vmatprep.subr.bf16.mxu0 0
  %161 = vmatpush1.bf16.msra.mxu0 0
  %162 = vmatprep.subr.bf16.mxu0 0
  %163 = vmatpush1.bf16.msra.mxu0 0
  %164 = vmatprep.subr.bf16.mxu0 0
  %165 = vmatpush1.bf16.msra.mxu0 0
  %166 = vmatprep.subr.bf16.mxu0 0
  %167 = vmatpush1.bf16.msra.mxu0 0
  %168 = vmatprep.subr.bf16.mxu0 0
  %169 = vmatpush1.bf16.msra.mxu0 0
  %170 = vmatprep.subr.bf16.mxu0 0
  %171 = vmatpush1.bf16.msra.mxu0 0
  %172 = vmatprep.subr.bf16.mxu0 0
  %173 = vmatpush1.bf16.msra.mxu0 0
  %174 = vmatprep.mubr.bf16.mxu0 0
  %175 = vmatmul.mubr.bf16.gmra.mrb[0].mxu0 %v140
  %v176 = vpop.f32.mrb[0].mxu0
  %v177 = vadd.f32 %v119, %v176
  %v178 = vpop.f32.mrb[0].mxu0
  %v179 = vpop.f32.mrb[0].mxu0
  %v180 = vadd.f32 %v119, %v179
  %v181 = vpop.f32.mrb[0].mxu0
  %182 = vdwg.mxu0
  %v183 = vld [vmem:[%s5] sm:$0xf]
  %v184 = vld [vmem:[%s5 + $0x4] sm:$0xf]
  %v185 = vld [vmem:[%s5 + $0x8] sm:$0xf]
  %v186 = vld [vmem:[%s5 + $0xc] sm:$0xf]
  %v187 = vld [vmem:[%s6] sm:$0x1]
  %v189 = vlaneseq
  %v190 = vshrl.u32 %v189, 7
  %v191 = vsub.s32 0, %v190
  %v192 = vrot.slane %v187, %v191
  %v198 = vunpack.c.l.b16 %v183
  %v199 = vunpack.c.l.b16 %v184
  %v200 = vunpack.c.l.b16 %v185
  %v201 = vunpack.c.l.b16 %v186
  %v202 = vpack.c.b16 %v199, %v198
  %v203 = vpack.c.b16 %v201, %v200
  %206 = vmatprep.subr.bf16.mxu0 0
  %207 = vmatpush1.bf16.msra.mxu0 %v202
  %208 = vmatprep.subr.bf16.mxu0 0
  %209 = vmatpush1.bf16.msra.mxu0 %v203
  %210 = vmatprep.subr.bf16.mxu0 0
  %211 = vmatpush1.bf16.msra.mxu0 0
  %212 = vmatprep.subr.bf16.mxu0 0
  %213 = vmatpush1.bf16.msra.mxu0 0
  %214 = vmatprep.subr.bf16.mxu0 0
  %215 = vmatpush1.bf16.msra.mxu0 0
  %216 = vmatprep.subr.bf16.mxu0 0
  %217 = vmatpush1.bf16.msra.mxu0 0
  %218 = vmatprep.subr.bf16.mxu0 0
  %219 = vmatpush1.bf16.msra.mxu0 0
  %220 = vmatprep.subr.bf16.mxu0 0
  %221 = vmatpush1.bf16.msra.mxu0 0
  %222 = vmatprep.subr.bf16.mxu0 0
  %223 = vmatpush1.bf16.msra.mxu0 0
  %224 = vmatprep.subr.bf16.mxu0 0
  %225 = vmatpush1.bf16.msra.mxu0 0
  %226 = vmatprep.subr.bf16.mxu0 0
  %227 = vmatpush1.bf16.msra.mxu0 0
  %228 = vmatprep.subr.bf16.mxu0 0
  %229 = vmatpush1.bf16.msra.mxu0 0
  %230 = vmatprep.subr.bf16.mxu0 0
  %231 = vmatpush1.bf16.msra.mxu0 0
  %232 = vmatprep.subr.bf16.mxu0 0
  %233 = vmatpush1.bf16.msra.mxu0 0
  %234 = vmatprep.subr.bf16.mxu0 0
  %235 = vmatpush1.bf16.msra.mxu0 0
  %236 = vmatprep.subr.bf16.mxu0 0
  %237 = vmatpush1.bf16.msra.mxu0 0
  %238 = vmatprep.mubr.bf16.mxu0 0
  %239 = vmatmul.mubr.bf16.gmra.mrb[0].mxu0 %v140
  %v240 = vpop.f32.mrb[0].mxu0
  %v241 = vadd.f32 %v192, %v240
  %v242 = vpop.f32.mrb[0].mxu0
  %v243 = vpop.f32.mrb[0].mxu0
  %v244 = vadd.f32 %v192, %v243
  %v245 = vpop.f32.mrb[0].mxu0
  %246 = vdwg.mxu0
  %v247 = vxor.u32 %v177, 2147483648
  %v248 = vxor.u32 %v180, 2147483648
  %v249 = vmul.f32 %v247, 1.442695
  %v250 = vpow.pop %v249
  %v251 = vmul.f32 %v248, 1.442695
  %v252 = vpow.pop %v251
  %v253 = vadd.f32 %v250, 1.0
  %v254 = vadd.f32 %v252, 1.0
  %v255 = vrcp.pop %v253
  %v256 = vmul.f32 1.0, %v255
  %v257 = vrcp.pop %v254
  %v258 = vmul.f32 1.0, %v257
  %v259 = vmul.f32 %v177, %v256
  %v260 = vmul.f32 %v180, %v258
  %v261 = vmul.f32 %v259, %v241
  %v262 = vmul.f32 %v260, %v244
  %v263 = vld [vmem:[#allocation3] sm:$0xff]
  %v264 = vld [vmem:[#allocation3 + $0x8] sm:$0x3]
  %v265 = vpack.c.bf16 %v262, %v261
  %v266 = vld [vmem:[%s7] sm:$0xf]
  %v267 = vld [vmem:[%s7 + $0x4] sm:$0xf]
  %v268 = vld [vmem:[%s7 + $0x8] sm:$0xf]
  %v269 = vld [vmem:[%s7 + $0xc] sm:$0xf]
  %v270 = vld [vmem:[%s7 + $0x10] sm:$0xf]
  %v271 = vld [vmem:[%s7 + $0x14] sm:$0xf]
  %v272 = vld [vmem:[%s7 + $0x18] sm:$0xf]
  %v273 = vld [vmem:[%s7 + $0x1c] sm:$0xf]
  %v282 = vunpack.c.l.b16 %v266
  %v283 = vunpack.c.l.b16 %v267
  %v284 = vunpack.c.l.b16 %v268
  %v285 = vunpack.c.l.b16 %v269
  %v286 = vunpack.c.l.b16 %v270
  %v287 = vunpack.c.l.b16 %v271
  %v288 = vunpack.c.l.b16 %v272
  %v289 = vunpack.c.l.b16 %v273
  %v290 = vpack.c.b16 %v283, %v282
  %v291 = vpack.c.b16 %v285, %v284
  %v292 = vpack.c.b16 %v287, %v286
  %v293 = vpack.c.b16 %v289, %v288
  %vm298 = vcmask 523264
  %v300 = vsel %vm298, %v265, 0
  %302 = vmatprep.subr.bf16.mxu0 0
  %303 = vmatpush1.bf16.msra.mxu0 %v290
  %304 = vmatprep.subr.bf16.mxu0 0
  %305 = vmatpush1.bf16.msra.mxu0 %v291
  %306 = vmatprep.subr.bf16.mxu0 0
  %307 = vmatpush1.bf16.msra.mxu0 %v292
  %308 = vmatprep.subr.bf16.mxu0 0
  %309 = vmatpush1.bf16.msra.mxu0 %v293
  %310 = vmatprep.subr.bf16.mxu0 0
  %311 = vmatpush1.bf16.msra.mxu0 0
  %312 = vmatprep.subr.bf16.mxu0 0
  %313 = vmatpush1.bf16.msra.mxu0 0
  %314 = vmatprep.subr.bf16.mxu0 0
  %315 = vmatpush1.bf16.msra.mxu0 0
  %316 = vmatprep.subr.bf16.mxu0 0
  %317 = vmatpush1.bf16.msra.mxu0 0
  %318 = vmatprep.subr.bf16.mxu0 0
  %319 = vmatpush1.bf16.msra.mxu0 0
  %320 = vmatprep.subr.bf16.mxu0 0
  %321 = vmatpush1.bf16.msra.mxu0 0
  %322 = vmatprep.subr.bf16.mxu0 0
  %323 = vmatpush1.bf16.msra.mxu0 0
  %324 = vmatprep.subr.bf16.mxu0 0
  %325 = vmatpush1.bf16.msra.mxu0 0
  %326 = vmatprep.subr.bf16.mxu0 0
  %327 = vmatpush1.bf16.msra.mxu0 0
  %328 = vmatprep.subr.bf16.mxu0 0
  %329 = vmatpush1.bf16.msra.mxu0 0
  %330 = vmatprep.subr.bf16.mxu0 0
  %331 = vmatpush1.bf16.msra.mxu0 0
  %332 = vmatprep.subr.bf16.mxu0 0
  %333 = vmatpush1.bf16.msra.mxu0 0
  %334 = vmatprep.mubr.bf16.mxu0 0
  %335 = vmatmul.mubr.bf16.gmra.mrb[0].mxu0 %v300
  %v336 = vpop.f32.mrb[0].mxu0
  %v337 = vadd.f32 0.0, %v336
  %v338 = vpop.f32.mrb[0].mxu0
  %v339 = vpop.f32.mrb[0].mxu0
  %v340 = vadd.f32 0.0, %v339
  %v341 = vpop.f32.mrb[0].mxu0
  %342 = vdwg.mxu0
  %v343 = vadd.f32 %v263, %v337
  %v344 = vadd.f32 %v264, %v340
  %345 = vst.msk [vmem:[#allocation3] sm:$0xff] %vm138, %v343
  %vm346 = vcmask 254976
  %347 = vst.msk [vmem:[#allocation3 + $0x8] sm:$0x3] %vm346, %v344
  // Predicated region
  $region50: #{frozen_dinov2_encoder_forward.14} parent=0 // pred_check
    %p348 = pneg %p39
  $region51: #{frozen_dinov2_encoder_forward.14} parent=0 // pred_check_branch
    %350 = sbr.rel (%p348) target = $region53
  $region52: #{frozen_dinov2_encoder_forward.14} parent=0 // pred_region
    %v351 = vld [vmem:[%s10] sm:$0xf]
    %v352 = vld [vmem:[%s10 + $0x4] sm:$0x1]
    %v353 = vunpack.c.l.bf16 %v351
    %v354 = vunpack.c.l.bf16 %v352
    %v355 = vld [vmem:[%s9] sm:$0x1]
    %v356 = vld [vmem:[#allocation3] sm:$0xff]
    %v357 = vld [vmem:[#allocation3 + $0x8] sm:$0x3]
    %v358 = vld [vmem:[%s8] sm:$0x1]
    %v360 = vlaneseq
    %v361 = vshrl.u32 %v360, 7
    %v362 = vsub.s32 0, %v361
    %v363 = vrot.slane %v358, %v362
    %v365 = vadd.f32 %v356, %v363
    %v366 = vadd.f32 %v357, %v363
    %v368 = vlaneseq
    %v369 = vshrl.u32 %v368, 7
    %v370 = vsub.s32 0, %v369
    %v371 = vrot.slane %v355, %v370
    %v373 = vmul.f32 %v371, %v365
    %v374 = vmul.f32 %v371, %v366
    %v375 = vadd.f32 %v353, %v373
    %v376 = vadd.f32 %v354, %v374
    %v377 = vpack.c.bf16 %v376, %v375
    %v379 = vunpack.c.l.b16 %v377
    %v380 = vunpack.c.h.b16 %v377
    %v381 = vpack.c.b16 %v379, %v379
    %v382 = vpack.c.b16 %v380, %v380
    %vm385 = vcmask 257024
    %386 = vst.msk [vmem:[%s11] sm:$0xf] %vm385, %v381
    %vm387 = vcmask 253952
    %388 = vst.msk [vmem:[%s11 + $0x4] sm:$0x1] %vm387, %v382
  $region53: #{frozen_dinov2_encoder_forward.14} parent=0 // pred_fallthru
    _
  // Predicated region
  $region54: #{frozen_dinov2_encoder_forward.14} parent=0 // pred_check
    _
  $region55: #{frozen_dinov2_encoder_forward.14} parent=0 // pred_check_branch
    %390 = sbr.rel (0) target = $region57
  $region56: #{frozen_dinov2_encoder_forward.14} parent=0 // pred_region
    _
  $region57: #{frozen_dinov2_encoder_forward.14} parent=0 // pred_fallthru
    _
  // Predicated region
  $region58: #{frozen_dinov2_encoder_forward.14} parent=0 // pred_check
    _
  $region59: #{frozen_dinov2_encoder_forward.14} parent=0 // pred_check_branch
    %392 = sbr.rel (0) target = $region61
  $region60: #{frozen_dinov2_encoder_forward.14} parent=0 // pred_region
    _
  $region61: #{frozen_dinov2_encoder_forward.14} parent=0 // pred_fallthru
    _

</llo_original>
